<compile_context>
chip_gen: v7x
topology: tpu7x:2x2x1
jax: 0.10.0
libtpu: 0.0.40
codegen_flags: <defaults>
</compile_context>

<pallas_src>
import functools

import jax
import jax.numpy as jnp
from jax.experimental import pallas as pl
from jax.experimental.pallas import tpu as pltpu

NEG_SLOPE = 0.2
BN_EPS = 1e-5


def _leaky_relu(x):
    return jnp.where(x >= 0, x, NEG_SLOPE * x)


def _h1_from_x(x_ref, w0_ref, b0_ref):
    """h1 = leaky_relu(x @ w0 + b0) for one pixel tile.

    The contraction has K = input_nc (tiny, e.g. 4), so it is done as a
    statically unrolled chain of broadcast multiply-adds on the VPU instead of
    an MXU matmul with a 4-deep contraction.
    """
    c_in = x_ref.shape[1]
    x = x_ref[...].astype(jnp.float32)
    h1 = x[:, 0:1] * w0_ref[0:1, :]
    for c in range(1, c_in):          # static unroll; c_in is tiny
        h1 = h1 + x[:, c:c + 1] * w0_ref[c:c + 1, :]
    return _leaky_relu(h1 + b0_ref[...])


def _stats_kernel(n_valid, needs_mask,
                  x_ref, w0_ref, b0_ref, w1_ref, sum_ref, sqsum_ref):
    """Per-tile partial sum / sum-of-squares of h2 (for BN batch statistics)."""
    tile = x_ref.shape[0]

    h1 = _h1_from_x(x_ref, w0_ref, b0_ref)
    # Second layer: K = ndf (e.g. 64) -> MXU matmul with f32 accumulation.
    h2 = jnp.dot(h1, w1_ref[...], preferred_element_type=jnp.float32)

    if needs_mask:  # static: only emitted when P was padded
        row = pl.program_id(0) * tile + jax.lax.broadcasted_iota(
            jnp.int32, (tile, 1), 0)
        h2 = jnp.where(row < n_valid, h2, 0.0)

    sum_ref[...] = jnp.sum(h2, axis=0, keepdims=True)[None]         # (1,1,ndf2)
    sqsum_ref[...] = jnp.sum(h2 * h2, axis=0, keepdims=True)[None]  # (1,1,ndf2)


def _out_kernel(x_ref, w0_ref, b0_ref, w1s_ref, bbn_ref, w2r_ref, out_ref):
    """Recompute h1, apply BN-folded conv2 + LeakyReLU + final conv."""
    h1 = _h1_from_x(x_ref, w0_ref, b0_ref)
    # BN is pre-folded into w1s / bbn on the host: y = h1 @ (w1*scale) + shift.
    y = _leaky_relu(jnp.dot(h1, w1s_ref[...], preferred_element_type=jnp.float32)
                    + bbn_ref[...])
    # Final 1x1 conv: contract the channel axis of y against the w2 row
    # vector, yielding a lane-dense (1, tile) block (unmasked stores,
    # contiguous HBM writeback).
    out_ref[...] = jax.lax.dot_general(
        w2r_ref[...], y, (((1,), (1,)), ((), ())),
        preferred_element_type=jnp.float32)


def pixel_discriminator(x, params, *, tile=512):
    N, C, H, W = x.shape
    P = N * H * W
    ndf = params["w0"].shape[1]
    ndf2 = params["w1"].shape[1]
    assert tile % 128 == 0, "tile must be a multiple of 128 (lane width)"

    # Don't over-pad tiny inputs; keep tile a multiple of 128.
    tile = min(tile, ((P + 127) // 128) * 128)

    x2 = jnp.transpose(x, (0, 2, 3, 1)).reshape(P, C).astype(jnp.float32)
    n_tiles = pl.cdiv(P, tile)
    P_pad = n_tiles * tile
    needs_mask = P_pad != P
    if needs_mask:
        x2 = jnp.pad(x2, ((0, P_pad - P), (0, 0)))
    grid = (n_tiles,)

    x_spec = pl.BlockSpec((tile, C), lambda i: (i, 0))
    w0_spec = pl.BlockSpec((C, ndf), lambda i: (0, 0))
    b0_spec = pl.BlockSpec((1, ndf), lambda i: (0, 0))
    w1_spec = pl.BlockSpec((ndf, ndf2), lambda i: (0, 0))
    vec_spec = lambda: pl.BlockSpec((1, ndf2), lambda i: (0, 0))

    # ---- Stage 1: BN batch statistics (no h2 intermediate to HBM). ----
    psum, psq = pl.pallas_call(
        functools.partial(_stats_kernel, P, needs_mask),
        out_shape=[
            jax.ShapeDtypeStruct((n_tiles, 1, ndf2), jnp.float32),
            jax.ShapeDtypeStruct((n_tiles, 1, ndf2), jnp.float32),
        ],
        grid_spec=pltpu.PrefetchScalarGridSpec(
            num_scalar_prefetch=0,
            grid=grid,
            in_specs=[x_spec, w0_spec, b0_spec, w1_spec],
            out_specs=[
                pl.BlockSpec((1, 1, ndf2), lambda i: (i, 0, 0)),
                pl.BlockSpec((1, 1, ndf2), lambda i: (i, 0, 0)),
            ],
        ),
        compiler_params=pltpu.CompilerParams(
            dimension_semantics=("parallel",)),
    )(x2, params["w0"], params["b0"], params["w1"])

    # ---- Host-side finalize (tiny: n_tiles x ndf2) + fold BN into conv2. ----
    inv_p = 1.0 / P
    mean = jnp.sum(psum, axis=0) * inv_p                              # (1, ndf2)
    var = jnp.maximum(jnp.sum(psq, axis=0) * inv_p - mean * mean, 0.0)  # biased
    scale = jax.lax.rsqrt(var + BN_EPS) * params["gamma"]             # (1, ndf2)
    w1s = params["w1"] * scale                                        # (ndf, ndf2)
    bbn = params["beta"] - mean * scale                               # (1, ndf2)
    w2r = params["w2"].reshape(1, ndf2)                               # row vector

    # ---- Stage 2: recompute h1, BN-folded conv2 + LeakyReLU + final conv. ----
    out_row = pl.pallas_call(
        _out_kernel,
        out_shape=jax.ShapeDtypeStruct((1, P_pad), jnp.float32),
        grid_spec=pltpu.PrefetchScalarGridSpec(
            num_scalar_prefetch=0,
            grid=grid,
            in_specs=[x_spec, w0_spec, b0_spec, w1_spec, vec_spec(), vec_spec()],
            out_specs=pl.BlockSpec((1, tile), lambda i: (0, i)),
        ),
        compiler_params=pltpu.CompilerParams(
            dimension_semantics=("parallel",)),
    )(x2, params["w0"], params["b0"], w1s, bbn, w2r)

    out = out_row[0, :P].reshape(N, H, W, 1).transpose(0, 3, 1, 2)
    return out


def init_params(key, input_nc, ndf=64):
    """Deterministic synthetic weights (pix2pix-style normal(0, 0.02) init)."""
    ks = jax.random.split(key, 6)
    ndf2 = 2 * ndf
    return {
        # conv weights stored as (C_in, C_out) for the flattened-pixel matmul
        "w0": 0.02 * jax.random.normal(ks[0], (input_nc, ndf), jnp.float32),
        "b0": 0.02 * jax.random.normal(ks[1], (1, ndf), jnp.float32),
        "w1": 0.02 * jax.random.normal(ks[2], (ndf, ndf2), jnp.float32),
        "gamma": (1.0 + 0.02 * jax.random.normal(ks[3], (1, ndf2), jnp.float32)),
        "beta": jnp.zeros((1, ndf2), jnp.float32),
        "w2": 0.02 * jax.random.normal(ks[4], (ndf2, 1), jnp.float32),
    }


def reference(x, params):
    """Pure-JAX reference of the same forward pass (for validation)."""
    N, C, H, W = x.shape
    xf = jnp.transpose(x, (0, 2, 3, 1)).reshape(-1, C).astype(jnp.float32)
    h1 = _leaky_relu(xf @ params["w0"] + params["b0"])
    h2 = h1 @ params["w1"]
    mean = h2.mean(0, keepdims=True)
    var = ((h2 - mean) ** 2).mean(0, keepdims=True)
    y = (h2 - mean) * jax.lax.rsqrt(var + BN_EPS) * params["gamma"] + params["beta"]
    y = _leaky_relu(y)
    out = y @ params["w2"]
    return out.reshape(N, H, W, 1).transpose(0, 3, 1, 2)


if __name__ == "__main__":
    key = jax.random.PRNGKey(0)
    k_x, k_p = jax.random.split(key)

    N, input_nc, H, W = 2, 4, 16, 16
    ndf = 64

    x = jax.random.normal(k_x, (N, input_nc, H, W), jnp.float32)
    params = init_params(k_p, input_nc, ndf)

    out = pixel_discriminator(x, params)
    out = jax.block_until_ready(out)

    ref = reference(x, params)
    assert out.shape == (N, 1, H, W), out.shape
    assert jnp.allclose(out, ref, rtol=1e-3, atol=2e-4), (
        float(jnp.max(jnp.abs(out - ref))))

    print("KERNEL_OK")
</pallas_src>

<mosaic_0001>
module attributes {stable_mosaic.version = 11 : i64} {
  func.func @_stats_kernel(%arg0: i32, %arg1: memref<512x4xf32, #tpu.memory_space<vmem>>, %arg2: memref<4x64xf32, #tpu.memory_space<vmem>>, %arg3: memref<1x64xf32, #tpu.memory_space<vmem>>, %arg4: memref<64x128xf32, #tpu.memory_space<vmem>>, %arg5: memref<1x1x128xf32, #tpu.memory_space<vmem>>, %arg6: memref<1x1x128xf32, #tpu.memory_space<vmem>>) attributes {dimension_semantics = [#tpu.dimension_semantics<parallel>], iteration_bounds = array<i64: 1>, scalar_prefetch = 0 : i64, scratch_operands = 0 : i64, tpu.core_type = #tpu.core_type<tc>, window_params = [{transform_indices = @transform_0, window_bounds = array<i64: 512, 4>}, {pipeline_mode = #tpu.pipeline_mode<synchronous>, transform_indices = @transform_1, window_bounds = array<i64: 4, 64>}, {pipeline_mode = #tpu.pipeline_mode<synchronous>, transform_indices = @transform_2, window_bounds = array<i64: 1, 64>}, {pipeline_mode = #tpu.pipeline_mode<synchronous>, transform_indices = @transform_3, window_bounds = array<i64: 64, 128>}, {transform_indices = @transform_4, window_bounds = array<i64: 1, 1, 128>}, {transform_indices = @transform_5, window_bounds = array<i64: 1, 1, 128>}]} {
    %c0 = arith.constant 0 : index
    %c0_0 = arith.constant 0 : index
    %0 = vector.load %arg1[%c0, %c0_0] : memref<512x4xf32, #tpu.memory_space<vmem>>, vector<512x4xf32>
    %1 = vector.extract_strided_slice %0 {offsets = [0, 0], sizes = [512, 1], strides = [1, 1]} : vector<512x4xf32> to vector<512x1xf32>
    %c0_1 = arith.constant 0 : index
    %c0_2 = arith.constant 0 : index
    %2 = vector.load %arg2[%c0_1, %c0_2] : memref<4x64xf32, #tpu.memory_space<vmem>>, vector<1x64xf32>
    %3 = vector.broadcast %1 : vector<512x1xf32> to vector<512x64xf32>
    %4 = vector.broadcast %2 : vector<1x64xf32> to vector<512x64xf32>
    %5 = arith.mulf %3, %4 : vector<512x64xf32>
    %6 = vector.extract_strided_slice %0 {offsets = [0, 1], sizes = [512, 1], strides = [1, 1]} : vector<512x4xf32> to vector<512x1xf32>
    %c1 = arith.constant 1 : index
    %c0_3 = arith.constant 0 : index
    %7 = vector.load %arg2[%c1, %c0_3] : memref<4x64xf32, #tpu.memory_space<vmem>>, vector<1x64xf32>
    %8 = vector.broadcast %6 : vector<512x1xf32> to vector<512x64xf32>
    %9 = vector.broadcast %7 : vector<1x64xf32> to vector<512x64xf32>
    %10 = arith.mulf %8, %9 : vector<512x64xf32>
    %11 = arith.addf %5, %10 : vector<512x64xf32>
    %12 = vector.extract_strided_slice %0 {offsets = [0, 2], sizes = [512, 1], strides = [1, 1]} : vector<512x4xf32> to vector<512x1xf32>
    %c2 = arith.constant 2 : index
    %c0_4 = arith.constant 0 : index
    %13 = vector.load %arg2[%c2, %c0_4] : memref<4x64xf32, #tpu.memory_space<vmem>>, vector<1x64xf32>
    %14 = vector.broadcast %12 : vector<512x1xf32> to vector<512x64xf32>
    %15 = vector.broadcast %13 : vector<1x64xf32> to vector<512x64xf32>
    %16 = arith.mulf %14, %15 : vector<512x64xf32>
    %17 = arith.addf %11, %16 : vector<512x64xf32>
    %18 = vector.extract_strided_slice %0 {offsets = [0, 3], sizes = [512, 1], strides = [1, 1]} : vector<512x4xf32> to vector<512x1xf32>
    %c3 = arith.constant 3 : index
    %c0_5 = arith.constant 0 : index
    %19 = vector.load %arg2[%c3, %c0_5] : memref<4x64xf32, #tpu.memory_space<vmem>>, vector<1x64xf32>
    %20 = vector.broadcast %18 : vector<512x1xf32> to vector<512x64xf32>
    %21 = vector.broadcast %19 : vector<1x64xf32> to vector<512x64xf32>
    %22 = arith.mulf %20, %21 : vector<512x64xf32>
    %23 = arith.addf %17, %22 : vector<512x64xf32>
    %c0_6 = arith.constant 0 : index
    %c0_7 = arith.constant 0 : index
    %24 = vector.load %arg3[%c0_6, %c0_7] : memref<1x64xf32, #tpu.memory_space<vmem>>, vector<1x64xf32>
    %25 = vector.broadcast %24 : vector<1x64xf32> to vector<512x64xf32>
    %26 = arith.addf %23, %25 : vector<512x64xf32>
    %cst = arith.constant 0.000000e+00 : f32
    %27 = vector.broadcast %cst : f32 to vector<512x64xf32>
    %28 = arith.cmpf oge, %26, %27 : vector<512x64xf32>
    %cst_8 = arith.constant 2.000000e-01 : f32
    %29 = vector.broadcast %cst_8 : f32 to vector<512x64xf32>
    %30 = arith.mulf %29, %26 : vector<512x64xf32>
    %31 = arith.select %28, %26, %30 : vector<512x64xi1>, vector<512x64xf32>
    %c0_9 = arith.constant 0 : index
    %c0_10 = arith.constant 0 : index
    %32 = vector.load %arg4[%c0_9, %c0_10] : memref<64x128xf32, #tpu.memory_space<vmem>>, vector<64x128xf32>
    %cst_11 = arith.constant dense<0.000000e+00> : vector<512x128xf32>
    %33 = tpu.matmul %31, %32, %cst_11 {dimension_numbers = #tpu.dot_dimension_numbers<[1], [0], [0], [1], [0, 0, 1, 1], [], []>} : vector<512x64xf32>, vector<64x128xf32>, vector<512x128xf32> -> vector<512x128xf32>
    %cst_12 = arith.constant dense<0.000000e+00> : vector<128xf32>
    %34 = vector.multi_reduction <add>, %33, %cst_12 [0] : vector<512x128xf32> to vector<128xf32>
    %35 = vector.shape_cast %34 : vector<128xf32> to vector<1x128xf32>
    %36 = vector.shape_cast %35 : vector<1x128xf32> to vector<1x1x128xf32>
    %c0_13 = arith.constant 0 : index
    %c0_14 = arith.constant 0 : index
    %c0_15 = arith.constant 0 : index
    %37 = vector.load %arg5[%c0_13, %c0_14, %c0_15] : memref<1x1x128xf32, #tpu.memory_space<vmem>>, vector<1x1x128xf32>
    tpu.vector_store %arg5[%c0_13, %c0_14, %c0_15], %36 {strides = array<i32>} : memref<1x1x128xf32, #tpu.memory_space<vmem>>, vector<1x1x128xf32>,
    %38 = arith.mulf %33, %33 : vector<512x128xf32>
    %cst_16 = arith.constant dense<0.000000e+00> : vector<128xf32>
    %39 = vector.multi_reduction <add>, %38, %cst_16 [0] : vector<512x128xf32> to vector<128xf32>
    %40 = vector.shape_cast %39 : vector<128xf32> to vector<1x128xf32>
    %41 = vector.shape_cast %40 : vector<1x128xf32> to vector<1x1x128xf32>
    %c0_17 = arith.constant 0 : index
    %c0_18 = arith.constant 0 : index
    %c0_19 = arith.constant 0 : index
    %42 = vector.load %arg6[%c0_17, %c0_18, %c0_19] : memref<1x1x128xf32, #tpu.memory_space<vmem>>, vector<1x1x128xf32>
    tpu.vector_store %arg6[%c0_17, %c0_18, %c0_19], %41 {strides = array<i32>} : memref<1x1x128xf32, #tpu.memory_space<vmem>>, vector<1x1x128xf32>,
    return
  }
  func.func @transform_0(%arg0: i32) -> (i32, i32) {
    %c0_i32 = arith.constant 0 : i32
    %c0_i32_0 = arith.constant 0 : i32
    return %arg0, %c0_i32 : i32, i32
  }
  func.func @transform_1(%arg0: i32) -> (i32, i32) {
    %c0_i32 = arith.constant 0 : i32
    %c0_i32_0 = arith.constant 0 : i32
    %c0_i32_1 = arith.constant 0 : i32
    return %c0_i32, %c0_i32_0 : i32, i32
  }
  func.func @transform_2(%arg0: i32) -> (i32, i32) {
    %c0_i32 = arith.constant 0 : i32
    %c0_i32_0 = arith.constant 0 : i32
    %c0_i32_1 = arith.constant 0 : i32
    return %c0_i32, %c0_i32_0 : i32, i32
  }
  func.func @transform_3(%arg0: i32) -> (i32, i32) {
    %c0_i32 = arith.constant 0 : i32
    %c0_i32_0 = arith.constant 0 : i32
    %c0_i32_1 = arith.constant 0 : i32
    return %c0_i32, %c0_i32_0 : i32, i32
  }
  func.func @transform_4(%arg0: i32) -> (i32, i32, i32) {
    %c0_i32 = arith.constant 0 : i32
    %c0_i32_0 = arith.constant 0 : i32
    %c0_i32_1 = arith.constant 0 : i32
    return %arg0, %c0_i32, %c0_i32_0 : i32, i32, i32
  }
  func.func @transform_5(%arg0: i32) -> (i32, i32, i32) {
    %c0_i32 = arith.constant 0 : i32
    %c0_i32_0 = arith.constant 0 : i32
    %c0_i32_1 = arith.constant 0 : i32
    return %arg0, %c0_i32, %c0_i32_0 : i32, i32, i32
  }
}

</mosaic_0001>

<llo_original>
// kernel: tpu_custom_call.1
$region0: #{tpu_custom_call.1}
  #allocation0 [shape = 'u32[]', space=smem, size = 0x4, offset = 0x4, fixed_abs, tag = 'smem constant byte address 0x4 - core index']
  #allocation1 [shape = 'u32[144,128]{1,0:T(1,128)}', space=vmem, size = 0x12000, scoped, tag = 'internal scratch']
  %s0 = inlined_call_operand.vmem [shape: f32[512,4], index: 0, kind: input, shape index: {}]
  %s1 = inlined_call_operand.vmem [shape: f32[4,64], index: 1, kind: input, shape index: {}]
  %s2 = inlined_call_operand.vmem [shape: f32[1,64], index: 2, kind: input, shape index: {}]
  %s3 = inlined_call_operand.vmem [shape: f32[64,128], index: 3, kind: input, shape index: {}]
  %s4 = inlined_call_operand.hbm [shape: f32[1,1,128], index: 4, kind: output, shape index: {0}]
  %s5 = inlined_call_operand.hbm [shape: f32[1,1,128], index: 5, kind: output, shape index: {1}]
  %6 = xla_tuple %s4, %s5
  %s7 = sld [smem:[#allocation0]]
  $region34: #{tpu_custom_call.1} parent=0
    _
  %s9 = ssub.s32 1, %s7
  %s10 = scalar_select 0, %s9, %s7
  $region1: #{tpu_custom_call.1} parent=0
    #allocation2 [shape = 'u8[512]{0}', space=vmem, size = 0x400, scoped, tag = 'output window, operand 0, single buffered']
    #allocation3 [shape = 's32[1]{0}', space=sflag, size = 0x4, scoped, tag = 'scoped memory for tpu_custom_call.1']
    #allocation4 [shape = 'u8[512]{0}', space=vmem, size = 0x400, scoped, tag = 'output window, operand 1, single buffered']
    #allocation5 [shape = 's32[1]{0}', space=sflag, size = 0x4, scoped, tag = 'scoped memory for tpu_custom_call.1']
    %11 = vsyncpa [#allocation3], 0
    %12 = vsyncpa [#allocation5], 0
    // Predicated region
    $region2: #{tpu_custom_call.1} parent=1 // pred_check
      _
    $region3: #{tpu_custom_call.1} parent=1 // pred_check_branch
      %14 = sbr.rel (0) target = $region5
    $region4: #{tpu_custom_call.1} parent=1 // pred_region
      _
    $region5: #{tpu_custom_call.1} parent=1 // pred_fallthru
      _
    // Predicated region
    $region6: #{tpu_custom_call.1} parent=1 // pred_check
      _
    $region7: #{tpu_custom_call.1} parent=1 // pred_check_branch
      %16 = sbr.rel (0) target = $region9
    $region8: #{tpu_custom_call.1} parent=1 // pred_region
      _
    $region9: #{tpu_custom_call.1} parent=1 // pred_fallthru
      _
    // Predicated region
    $region10: #{tpu_custom_call.1} parent=1 // pred_check
      _
    $region11: #{tpu_custom_call.1} parent=1 // pred_check_branch
      %18 = sbr.rel (0) target = $region13
    $region12: #{tpu_custom_call.1} parent=1 // pred_region
      _
    $region13: #{tpu_custom_call.1} parent=1 // pred_fallthru
      _
    // Predicated region
    $region14: #{tpu_custom_call.1} parent=1 // pred_check
      _
    $region15: #{tpu_custom_call.1} parent=1 // pred_check_branch
      %20 = sbr.rel (0) target = $region17
    $region16: #{tpu_custom_call.1} parent=1 // pred_region
      _
    $region17: #{tpu_custom_call.1} parent=1 // pred_fallthru
      _
    %v21 = vld [vmem:[%s0] sm:$0xff]
    %v22 = vld [vmem:[%s0 + $0x8] sm:$0xff]
    %v23 = vld [vmem:[%s0 + $0x10] sm:$0xff]
    %v24 = vld [vmem:[%s0 + $0x18] sm:$0xff]
    %v25 = vld [vmem:[%s0 + $0x20] sm:$0xff]
    %v26 = vld [vmem:[%s0 + $0x28] sm:$0xff]
    %v27 = vld [vmem:[%s0 + $0x30] sm:$0xff]
    %v28 = vld [vmem:[%s0 + $0x38] sm:$0xff]
    %v29 = vld [vmem:[%s0 + $0x40] sm:$0xff]
    %v30 = vld [vmem:[%s0 + $0x48] sm:$0xff]
    %v31 = vld [vmem:[%s0 + $0x50] sm:$0xff]
    %v32 = vld [vmem:[%s0 + $0x58] sm:$0xff]
    %v33 = vld [vmem:[%s0 + $0x60] sm:$0xff]
    %v34 = vld [vmem:[%s0 + $0x68] sm:$0xff]
    %v35 = vld [vmem:[%s0 + $0x70] sm:$0xff]
    %v36 = vld [vmem:[%s0 + $0x78] sm:$0xff]
    %v37 = vld [vmem:[%s0 + $0x80] sm:$0xff]
    %v38 = vld [vmem:[%s0 + $0x88] sm:$0xff]
    %v39 = vld [vmem:[%s0 + $0x90] sm:$0xff]
    %v40 = vld [vmem:[%s0 + $0x98] sm:$0xff]
    %v41 = vld [vmem:[%s0 + $0xa0] sm:$0xff]
    %v42 = vld [vmem:[%s0 + $0xa8] sm:$0xff]
    %v43 = vld [vmem:[%s0 + $0xb0] sm:$0xff]
    %v44 = vld [vmem:[%s0 + $0xb8] sm:$0xff]
    %v45 = vld [vmem:[%s0 + $0xc0] sm:$0xff]
    %v46 = vld [vmem:[%s0 + $0xc8] sm:$0xff]
    %v47 = vld [vmem:[%s0 + $0xd0] sm:$0xff]
    %v48 = vld [vmem:[%s0 + $0xd8] sm:$0xff]
    %v49 = vld [vmem:[%s0 + $0xe0] sm:$0xff]
    %v50 = vld [vmem:[%s0 + $0xe8] sm:$0xff]
    %v51 = vld [vmem:[%s0 + $0xf0] sm:$0xff]
    %v52 = vld [vmem:[%s0 + $0xf8] sm:$0xff]
    %v53 = vld [vmem:[%s0 + $0x100] sm:$0xff]
    %v54 = vld [vmem:[%s0 + $0x108] sm:$0xff]
    %v55 = vld [vmem:[%s0 + $0x110] sm:$0xff]
    %v56 = vld [vmem:[%s0 + $0x118] sm:$0xff]
    %v57 = vld [vmem:[%s0 + $0x120] sm:$0xff]
    %v58 = vld [vmem:[%s0 + $0x128] sm:$0xff]
    %v59 = vld [vmem:[%s0 + $0x130] sm:$0xff]
    %v60 = vld [vmem:[%s0 + $0x138] sm:$0xff]
    %v61 = vld [vmem:[%s0 + $0x140] sm:$0xff]
    %v62 = vld [vmem:[%s0 + $0x148] sm:$0xff]
    %v63 = vld [vmem:[%s0 + $0x150] sm:$0xff]
    %v64 = vld [vmem:[%s0 + $0x158] sm:$0xff]
    %v65 = vld [vmem:[%s0 + $0x160] sm:$0xff]
    %v66 = vld [vmem:[%s0 + $0x168] sm:$0xff]
    %v67 = vld [vmem:[%s0 + $0x170] sm:$0xff]
    %v68 = vld [vmem:[%s0 + $0x178] sm:$0xff]
    %v69 = vld [vmem:[%s0 + $0x180] sm:$0xff]
    %v70 = vld [vmem:[%s0 + $0x188] sm:$0xff]
    %v71 = vld [vmem:[%s0 + $0x190] sm:$0xff]
    %v72 = vld [vmem:[%s0 + $0x198] sm:$0xff]
    %v73 = vld [vmem:[%s0 + $0x1a0] sm:$0xff]
    %v74 = vld [vmem:[%s0 + $0x1a8] sm:$0xff]
    %v75 = vld [vmem:[%s0 + $0x1b0] sm:$0xff]
    %v76 = vld [vmem:[%s0 + $0x1b8] sm:$0xff]
    %v77 = vld [vmem:[%s0 + $0x1c0] sm:$0xff]
    %v78 = vld [vmem:[%s0 + $0x1c8] sm:$0xff]
    %v79 = vld [vmem:[%s0 + $0x1d0] sm:$0xff]
    %v80 = vld [vmem:[%s0 + $0x1d8] sm:$0xff]
    %v81 = vld [vmem:[%s0 + $0x1e0] sm:$0xff]
    %v82 = vld [vmem:[%s0 + $0x1e8] sm:$0xff]
    %v83 = vld [vmem:[%s0 + $0x1f0] sm:$0xff]
    %v84 = vld [vmem:[%s0 + $0x1f8] sm:$0xff]
    %v85 = vld [vmem:[%s1] sm:$0x1]
    %87 = vset.pattern.permute.xlu0 0
    %88 = vperm.xlu0 %87, %v21
    %v89 = vpop.permute.xlu0 %88
    %92 = vset.pattern.permute.xlu0 0
    %93 = vperm.xlu0 %92, %v22
    %v94 = vpop.permute.xlu0 %93
    %97 = vset.pattern.permute.xlu0 0
    %98 = vperm.xlu0 %97, %v23
    %v99 = vpop.permute.xlu0 %98
    %102 = vset.pattern.permute.xlu0 0
    %103 = vperm.xlu0 %102, %v24
    %v104 = vpop.permute.xlu0 %103
    %107 = vset.pattern.permute.xlu0 0
    %108 = vperm.xlu0 %107, %v25
    %v109 = vpop.permute.xlu0 %108
    %112 = vset.pattern.permute.xlu0 0
    %113 = vperm.xlu0 %112, %v26
    %v114 = vpop.permute.xlu0 %113
    %117 = vset.pattern.permute.xlu0 0
    %118 = vperm.xlu0 %117, %v27
    %v119 = vpop.permute.xlu0 %118
    %122 = vset.pattern.permute.xlu0 0
    %123 = vperm.xlu0 %122, %v28
    %v124 = vpop.permute.xlu0 %123
    %127 = vset.pattern.permute.xlu0 0
    %128 = vperm.xlu0 %127, %v29
    %v129 = vpop.permute.xlu0 %128
    %132 = vset.pattern.permute.xlu0 0
    %133 = vperm.xlu0 %132, %v30
    %v134 = vpop.permute.xlu0 %133
    %137 = vset.pattern.permute.xlu0 0
    %138 = vperm.xlu0 %137, %v31
    %v139 = vpop.permute.xlu0 %138
    %142 = vset.pattern.permute.xlu0 0
    %143 = vperm.xlu0 %142, %v32
    %v144 = vpop.permute.xlu0 %143
    %147 = vset.pattern.permute.xlu0 0
    %148 = vperm.xlu0 %147, %v33
    %v149 = vpop.permute.xlu0 %148
    %152 = vset.pattern.permute.xlu0 0
    %153 = vperm.xlu0 %152, %v34
    %v154 = vpop.permute.xlu0 %153
    %157 = vset.pattern.permute.xlu0 0
    %158 = vperm.xlu0 %157, %v35
    %v159 = vpop.permute.xlu0 %158
    %162 = vset.pattern.permute.xlu0 0
    %163 = vperm.xlu0 %162, %v36
    %v164 = vpop.permute.xlu0 %163
    %167 = vset.pattern.permute.xlu0 0
    %168 = vperm.xlu0 %167, %v37
    %v169 = vpop.permute.xlu0 %168
    %172 = vset.pattern.permute.xlu0 0
    %173 = vperm.xlu0 %172, %v38
    %v174 = vpop.permute.xlu0 %173
    %177 = vset.pattern.permute.xlu0 0
    %178 = vperm.xlu0 %177, %v39
    %v179 = vpop.permute.xlu0 %178
    %182 = vset.pattern.permute.xlu0 0
    %183 = vperm.xlu0 %182, %v40
    %v184 = vpop.permute.xlu0 %183
    %187 = vset.pattern.permute.xlu0 0
    %188 = vperm.xlu0 %187, %v41
    %v189 = vpop.permute.xlu0 %188
    %192 = vset.pattern.permute.xlu0 0
    %193 = vperm.xlu0 %192, %v42
    %v194 = vpop.permute.xlu0 %193
    %197 = vset.pattern.permute.xlu0 0
    %198 = vperm.xlu0 %197, %v43
    %v199 = vpop.permute.xlu0 %198
    %202 = vset.pattern.permute.xlu0 0
    %203 = vperm.xlu0 %202, %v44
    %v204 = vpop.permute.xlu0 %203
    %207 = vset.pattern.permute.xlu0 0
    %208 = vperm.xlu0 %207, %v45
    %v209 = vpop.permute.xlu0 %208
    %212 = vset.pattern.permute.xlu0 0
    %213 = vperm.xlu0 %212, %v46
    %v214 = vpop.permute.xlu0 %213
    %217 = vset.pattern.permute.xlu0 0
    %218 = vperm.xlu0 %217, %v47
    %v219 = vpop.permute.xlu0 %218
    %222 = vset.pattern.permute.xlu0 0
    %223 = vperm.xlu0 %222, %v48
    %v224 = vpop.permute.xlu0 %223
    %227 = vset.pattern.permute.xlu0 0
    %228 = vperm.xlu0 %227, %v49
    %v229 = vpop.permute.xlu0 %228
    %232 = vset.pattern.permute.xlu0 0
    %233 = vperm.xlu0 %232, %v50
    %v234 = vpop.permute.xlu0 %233
    %237 = vset.pattern.permute.xlu0 0
    %238 = vperm.xlu0 %237, %v51
    %v239 = vpop.permute.xlu0 %238
    %242 = vset.pattern.permute.xlu0 0
    %243 = vperm.xlu0 %242, %v52
    %v244 = vpop.permute.xlu0 %243
    %247 = vset.pattern.permute.xlu0 0
    %248 = vperm.xlu0 %247, %v53
    %v249 = vpop.permute.xlu0 %248
    %252 = vset.pattern.permute.xlu0 0
    %253 = vperm.xlu0 %252, %v54
    %v254 = vpop.permute.xlu0 %253
    %257 = vset.pattern.permute.xlu0 0
    %258 = vperm.xlu0 %257, %v55
    %v259 = vpop.permute.xlu0 %258
    %262 = vset.pattern.permute.xlu0 0
    %263 = vperm.xlu0 %262, %v56
    %v264 = vpop.permute.xlu0 %263
    %267 = vset.pattern.permute.xlu0 0
    %268 = vperm.xlu0 %267, %v57
    %v269 = vpop.permute.xlu0 %268
    %272 = vset.pattern.permute.xlu0 0
    %273 = vperm.xlu0 %272, %v58
    %v274 = vpop.permute.xlu0 %273
    %277 = vset.pattern.permute.xlu0 0
    %278 = vperm.xlu0 %277, %v59
    %v279 = vpop.permute.xlu0 %278
    %282 = vset.pattern.permute.xlu0 0
    %283 = vperm.xlu0 %282, %v60
    %v284 = vpop.permute.xlu0 %283
    %287 = vset.pattern.permute.xlu0 0
    %288 = vperm.xlu0 %287, %v61
    %v289 = vpop.permute.xlu0 %288
    %292 = vset.pattern.permute.xlu0 0
    %293 = vperm.xlu0 %292, %v62
    %v294 = vpop.permute.xlu0 %293
    %297 = vset.pattern.permute.xlu0 0
    %298 = vperm.xlu0 %297, %v63
    %v299 = vpop.permute.xlu0 %298
    %302 = vset.pattern.permute.xlu0 0
    %303 = vperm.xlu0 %302, %v64
    %v304 = vpop.permute.xlu0 %303
    %307 = vset.pattern.permute.xlu0 0
    %308 = vperm.xlu0 %307, %v65
    %v309 = vpop.permute.xlu0 %308
    %312 = vset.pattern.permute.xlu0 0
    %313 = vperm.xlu0 %312, %v66
    %v314 = vpop.permute.xlu0 %313
    %317 = vset.pattern.permute.xlu0 0
    %318 = vperm.xlu0 %317, %v67
    %v319 = vpop.permute.xlu0 %318
    %322 = vset.pattern.permute.xlu0 0
    %323 = vperm.xlu0 %322, %v68
    %v324 = vpop.permute.xlu0 %323
    %327 = vset.pattern.permute.xlu0 0
    %328 = vperm.xlu0 %327, %v69
    %v329 = vpop.permute.xlu0 %328
    %332 = vset.pattern.permute.xlu0 0
    %333 = vperm.xlu0 %332, %v70
    %v334 = vpop.permute.xlu0 %333
    %337 = vset.pattern.permute.xlu0 0
    %338 = vperm.xlu0 %337, %v71
    %v339 = vpop.permute.xlu0 %338
    %342 = vset.pattern.permute.xlu0 0
    %343 = vperm.xlu0 %342, %v72
    %v344 = vpop.permute.xlu0 %343
    %347 = vset.pattern.permute.xlu0 0
    %348 = vperm.xlu0 %347, %v73
    %v349 = vpop.permute.xlu0 %348
    %352 = vset.pattern.permute.xlu0 0
    %353 = vperm.xlu0 %352, %v74
    %v354 = vpop.permute.xlu0 %353
    %357 = vset.pattern.permute.xlu0 0
    %358 = vperm.xlu0 %357, %v75
    %v359 = vpop.permute.xlu0 %358
    %362 = vset.pattern.permute.xlu0 0
    %363 = vperm.xlu0 %362, %v76
    %v364 = vpop.permute.xlu0 %363
    %367 = vset.pattern.permute.xlu0 0
    %368 = vperm.xlu0 %367, %v77
    %v369 = vpop.permute.xlu0 %368
    %372 = vset.pattern.permute.xlu0 0
    %373 = vperm.xlu0 %372, %v78
    %v374 = vpop.permute.xlu0 %373
    %377 = vset.pattern.permute.xlu0 0
    %378 = vperm.xlu0 %377, %v79
    %v379 = vpop.permute.xlu0 %378
    %382 = vset.pattern.permute.xlu0 0
    %383 = vperm.xlu0 %382, %v80
    %v384 = vpop.permute.xlu0 %383
    %387 = vset.pattern.permute.xlu0 0
    %388 = vperm.xlu0 %387, %v81
    %v389 = vpop.permute.xlu0 %388
    %392 = vset.pattern.permute.xlu0 0
    %393 = vperm.xlu0 %392, %v82
    %v394 = vpop.permute.xlu0 %393
    %397 = vset.pattern.permute.xlu0 0
    %398 = vperm.xlu0 %397, %v83
    %v399 = vpop.permute.xlu0 %398
    %402 = vset.pattern.permute.xlu0 0
    %403 = vperm.xlu0 %402, %v84
    %v404 = vpop.permute.xlu0 %403
    %v406 = vlaneseq
    %v407 = vshrl.u32 %v406, 7
    %v408 = vsub.s32 0, %v407
    %v409 = vrot.slane %v85, %v408
    %v410 = vmul.f32 %v89, %v409
    %v411 = vmul.f32 %v94, %v409
    %v412 = vmul.f32 %v99, %v409
    %v413 = vmul.f32 %v104, %v409
    %v414 = vmul.f32 %v109, %v409
    %v415 = vmul.f32 %v114, %v409
    %v416 = vmul.f32 %v119, %v409
    %v417 = vmul.f32 %v124, %v409
    %v418 = vmul.f32 %v129, %v409
    %v419 = vmul.f32 %v134, %v409
    %v420 = vmul.f32 %v139, %v409
    %v421 = vmul.f32 %v144, %v409
    %v422 = vmul.f32 %v149, %v409
    %v423 = vmul.f32 %v154, %v409
    %v424 = vmul.f32 %v159, %v409
    %v425 = vmul.f32 %v164, %v409
    %v426 = vmul.f32 %v169, %v409
    %v427 = vmul.f32 %v174, %v409
    %v428 = vmul.f32 %v179, %v409
    %v429 = vmul.f32 %v184, %v409
    %v430 = vmul.f32 %v189, %v409
    %v431 = vmul.f32 %v194, %v409
    %v432 = vmul.f32 %v199, %v409
    %v433 = vmul.f32 %v204, %v409
    %v434 = vmul.f32 %v209, %v409
    %v435 = vmul.f32 %v214, %v409
    %v436 = vmul.f32 %v219, %v409
    %v437 = vmul.f32 %v224, %v409
    %v438 = vmul.f32 %v229, %v409
    %v439 = vmul.f32 %v234, %v409
    %v440 = vmul.f32 %v239, %v409
    %v441 = vmul.f32 %v244, %v409
    %v442 = vmul.f32 %v249, %v409
    %v443 = vmul.f32 %v254, %v409
    %v444 = vmul.f32 %v259, %v409
    %v445 = vmul.f32 %v264, %v409
    %v446 = vmul.f32 %v269, %v409
    %v447 = vmul.f32 %v274, %v409
    %v448 = vmul.f32 %v279, %v409
    %v449 = vmul.f32 %v284, %v409
    %v450 = vmul.f32 %v289, %v409
    %v451 = vmul.f32 %v294, %v409
    %v452 = vmul.f32 %v299, %v409
    %v453 = vmul.f32 %v304, %v409
    %v454 = vmul.f32 %v309, %v409
    %v455 = vmul.f32 %v314, %v409
    %v456 = vmul.f32 %v319, %v409
    %v457 = vmul.f32 %v324, %v409
    %v458 = vmul.f32 %v329, %v409
    %v459 = vmul.f32 %v334, %v409
    %v460 = vmul.f32 %v339, %v409
    %v461 = vmul.f32 %v344, %v409
    %v462 = vmul.f32 %v349, %v409
    %v463 = vmul.f32 %v354, %v409
    %v464 = vmul.f32 %v359, %v409
    %v465 = vmul.f32 %v364, %v409
    %v466 = vmul.f32 %v369, %v409
    %v467 = vmul.f32 %v374, %v409
    %v468 = vmul.f32 %v379, %v409
    %v469 = vmul.f32 %v384, %v409
    %v470 = vmul.f32 %v389, %v409
    %v471 = vmul.f32 %v394, %v409
    %v472 = vmul.f32 %v399, %v409
    %v473 = vmul.f32 %v404, %v409
    %v474 = vld [vmem:[%s1 + $0x1] sm:$0x1]
    %475 = vset.pattern.permute.xlu0 1
    %476 = vperm.xlu0 %475, %v21
    %v477 = vpop.permute.xlu0 %476
    %479 = vset.pattern.permute.xlu0 1
    %480 = vperm.xlu0 %479, %v22
    %v481 = vpop.permute.xlu0 %480
    %483 = vset.pattern.permute.xlu0 1
    %484 = vperm.xlu0 %483, %v23
    %v485 = vpop.permute.xlu0 %484
    %487 = vset.pattern.permute.xlu0 1
    %488 = vperm.xlu0 %487, %v24
    %v489 = vpop.permute.xlu0 %488
    %491 = vset.pattern.permute.xlu0 1
    %492 = vperm.xlu0 %491, %v25
    %v493 = vpop.permute.xlu0 %492
    %495 = vset.pattern.permute.xlu0 1
    %496 = vperm.xlu0 %495, %v26
    %v497 = vpop.permute.xlu0 %496
    %499 = vset.pattern.permute.xlu0 1
    %500 = vperm.xlu0 %499, %v27
    %v501 = vpop.permute.xlu0 %500
    %503 = vset.pattern.permute.xlu0 1
    %504 = vperm.xlu0 %503, %v28
    %v505 = vpop.permute.xlu0 %504
    %507 = vset.pattern.permute.xlu0 1
    %508 = vperm.xlu0 %507, %v29
    %v509 = vpop.permute.xlu0 %508
    %511 = vset.pattern.permute.xlu0 1
    %512 = vperm.xlu0 %511, %v30
    %v513 = vpop.permute.xlu0 %512
    %515 = vset.pattern.permute.xlu0 1
    %516 = vperm.xlu0 %515, %v31
    %v517 = vpop.permute.xlu0 %516
    %519 = vset.pattern.permute.xlu0 1
    %520 = vperm.xlu0 %519, %v32
    %v521 = vpop.permute.xlu0 %520
    %523 = vset.pattern.permute.xlu0 1
    %524 = vperm.xlu0 %523, %v33
    %v525 = vpop.permute.xlu0 %524
    %527 = vset.pattern.permute.xlu0 1
    %528 = vperm.xlu0 %527, %v34
    %v529 = vpop.permute.xlu0 %528
    %531 = vset.pattern.permute.xlu0 1
    %532 = vperm.xlu0 %531, %v35
    %v533 = vpop.permute.xlu0 %532
    %535 = vset.pattern.permute.xlu0 1
    %536 = vperm.xlu0 %535, %v36
    %v537 = vpop.permute.xlu0 %536
    %539 = vset.pattern.permute.xlu0 1
    %540 = vperm.xlu0 %539, %v37
    %v541 = vpop.permute.xlu0 %540
    %543 = vset.pattern.permute.xlu0 1
    %544 = vperm.xlu0 %543, %v38
    %v545 = vpop.permute.xlu0 %544
    %547 = vset.pattern.permute.xlu0 1
    %548 = vperm.xlu0 %547, %v39
    %v549 = vpop.permute.xlu0 %548
    %551 = vset.pattern.permute.xlu0 1
    %552 = vperm.xlu0 %551, %v40
    %v553 = vpop.permute.xlu0 %552
    %555 = vset.pattern.permute.xlu0 1
    %556 = vperm.xlu0 %555, %v41
    %v557 = vpop.permute.xlu0 %556
    %559 = vset.pattern.permute.xlu0 1
    %560 = vperm.xlu0 %559, %v42
    %v561 = vpop.permute.xlu0 %560
    %563 = vset.pattern.permute.xlu0 1
    %564 = vperm.xlu0 %563, %v43
    %v565 = vpop.permute.xlu0 %564
    %567 = vset.pattern.permute.xlu0 1
    %568 = vperm.xlu0 %567, %v44
    %v569 = vpop.permute.xlu0 %568
    %571 = vset.pattern.permute.xlu0 1
    %572 = vperm.xlu0 %571, %v45
    %v573 = vpop.permute.xlu0 %572
    %575 = vset.pattern.permute.xlu0 1
    %576 = vperm.xlu0 %575, %v46
    %v577 = vpop.permute.xlu0 %576
    %579 = vset.pattern.permute.xlu0 1
    %580 = vperm.xlu0 %579, %v47
    %v581 = vpop.permute.xlu0 %580
    %583 = vset.pattern.permute.xlu0 1
    %584 = vperm.xlu0 %583, %v48
    %v585 = vpop.permute.xlu0 %584
    %587 = vset.pattern.permute.xlu0 1
    %588 = vperm.xlu0 %587, %v49
    %v589 = vpop.permute.xlu0 %588
    %591 = vset.pattern.permute.xlu0 1
    %592 = vperm.xlu0 %591, %v50
    %v593 = vpop.permute.xlu0 %592
    %595 = vset.pattern.permute.xlu0 1
    %596 = vperm.xlu0 %595, %v51
    %v597 = vpop.permute.xlu0 %596
    %599 = vset.pattern.permute.xlu0 1
    %600 = vperm.xlu0 %599, %v52
    %v601 = vpop.permute.xlu0 %600
    %603 = vset.pattern.permute.xlu0 1
    %604 = vperm.xlu0 %603, %v53
    %v605 = vpop.permute.xlu0 %604
    %607 = vset.pattern.permute.xlu0 1
    %608 = vperm.xlu0 %607, %v54
    %v609 = vpop.permute.xlu0 %608
    %611 = vset.pattern.permute.xlu0 1
    %612 = vperm.xlu0 %611, %v55
    %v613 = vpop.permute.xlu0 %612
    %615 = vset.pattern.permute.xlu0 1
    %616 = vperm.xlu0 %615, %v56
    %v617 = vpop.permute.xlu0 %616
    %619 = vset.pattern.permute.xlu0 1
    %620 = vperm.xlu0 %619, %v57
    %v621 = vpop.permute.xlu0 %620
    %623 = vset.pattern.permute.xlu0 1
    %624 = vperm.xlu0 %623, %v58
    %v625 = vpop.permute.xlu0 %624
    %627 = vset.pattern.permute.xlu0 1
    %628 = vperm.xlu0 %627, %v59
    %v629 = vpop.permute.xlu0 %628
    %631 = vset.pattern.permute.xlu0 1
    %632 = vperm.xlu0 %631, %v60
    %v633 = vpop.permute.xlu0 %632
    %635 = vset.pattern.permute.xlu0 1
    %636 = vperm.xlu0 %635, %v61
    %v637 = vpop.permute.xlu0 %636
    %639 = vset.pattern.permute.xlu0 1
    %640 = vperm.xlu0 %639, %v62
    %v641 = vpop.permute.xlu0 %640
    %643 = vset.pattern.permute.xlu0 1
    %644 = vperm.xlu0 %643, %v63
    %v645 = vpop.permute.xlu0 %644
    %647 = vset.pattern.permute.xlu0 1
    %648 = vperm.xlu0 %647, %v64
    %v649 = vpop.permute.xlu0 %648
    %651 = vset.pattern.permute.xlu0 1
    %652 = vperm.xlu0 %651, %v65
    %v653 = vpop.permute.xlu0 %652
    %655 = vset.pattern.permute.xlu0 1
    %656 = vperm.xlu0 %655, %v66
    %v657 = vpop.permute.xlu0 %656
    %659 = vset.pattern.permute.xlu0 1
    %660 = vperm.xlu0 %659, %v67
    %v661 = vpop.permute.xlu0 %660
    %663 = vset.pattern.permute.xlu0 1
    %664 = vperm.xlu0 %663, %v68
    %v665 = vpop.permute.xlu0 %664
    %667 = vset.pattern.permute.xlu0 1
    %668 = vperm.xlu0 %667, %v69
    %v669 = vpop.permute.xlu0 %668
    %671 = vset.pattern.permute.xlu0 1
    %672 = vperm.xlu0 %671, %v70
    %v673 = vpop.permute.xlu0 %672
    %675 = vset.pattern.permute.xlu0 1
    %676 = vperm.xlu0 %675, %v71
    %v677 = vpop.permute.xlu0 %676
    %679 = vset.pattern.permute.xlu0 1
    %680 = vperm.xlu0 %679, %v72
    %v681 = vpop.permute.xlu0 %680
    %683 = vset.pattern.permute.xlu0 1
    %684 = vperm.xlu0 %683, %v73
    %v685 = vpop.permute.xlu0 %684
    %687 = vset.pattern.permute.xlu0 1
    %688 = vperm.xlu0 %687, %v74
    %v689 = vpop.permute.xlu0 %688
    %691 = vset.pattern.permute.xlu0 1
    %692 = vperm.xlu0 %691, %v75
    %v693 = vpop.permute.xlu0 %692
    %695 = vset.pattern.permute.xlu0 1
    %696 = vperm.xlu0 %695, %v76
    %v697 = vpop.permute.xlu0 %696
    %699 = vset.pattern.permute.xlu0 1
    %700 = vperm.xlu0 %699, %v77
    %v701 = vpop.permute.xlu0 %700
    %703 = vset.pattern.permute.xlu0 1
    %704 = vperm.xlu0 %703, %v78
    %v705 = vpop.permute.xlu0 %704
    %707 = vset.pattern.permute.xlu0 1
    %708 = vperm.xlu0 %707, %v79
    %v709 = vpop.permute.xlu0 %708
    %711 = vset.pattern.permute.xlu0 1
    %712 = vperm.xlu0 %711, %v80
    %v713 = vpop.permute.xlu0 %712
    %715 = vset.pattern.permute.xlu0 1
    %716 = vperm.xlu0 %715, %v81
    %v717 = vpop.permute.xlu0 %716
    %719 = vset.pattern.permute.xlu0 1
    %720 = vperm.xlu0 %719, %v82
    %v721 = vpop.permute.xlu0 %720
    %723 = vset.pattern.permute.xlu0 1
    %724 = vperm.xlu0 %723, %v83
    %v725 = vpop.permute.xlu0 %724
    %727 = vset.pattern.permute.xlu0 1
    %728 = vperm.xlu0 %727, %v84
    %v729 = vpop.permute.xlu0 %728
    %v731 = vlaneseq
    %v732 = vshrl.u32 %v731, 7
    %v733 = vsub.s32 0, %v732
    %v734 = vrot.slane %v474, %v733
    %v735 = vmul.f32 %v477, %v734
    %v736 = vmul.f32 %v481, %v734
    %v737 = vmul.f32 %v485, %v734
    %v738 = vmul.f32 %v489, %v734
    %v739 = vmul.f32 %v493, %v734
    %v740 = vmul.f32 %v497, %v734
    %v741 = vmul.f32 %v501, %v734
    %v742 = vmul.f32 %v505, %v734
    %v743 = vmul.f32 %v509, %v734
    %v744 = vmul.f32 %v513, %v734
    %v745 = vmul.f32 %v517, %v734
    %v746 = vmul.f32 %v521, %v734
    %v747 = vmul.f32 %v525, %v734
    %v748 = vmul.f32 %v529, %v734
    %v749 = vmul.f32 %v533, %v734
    %v750 = vmul.f32 %v537, %v734
    %v751 = vmul.f32 %v541, %v734
    %v752 = vmul.f32 %v545, %v734
    %v753 = vmul.f32 %v549, %v734
    %v754 = vmul.f32 %v553, %v734
    %v755 = vmul.f32 %v557, %v734
    %v756 = vmul.f32 %v561, %v734
    %v757 = vmul.f32 %v565, %v734
    %v758 = vmul.f32 %v569, %v734
    %v759 = vmul.f32 %v573, %v734
    %v760 = vmul.f32 %v577, %v734
    %v761 = vmul.f32 %v581, %v734
    %v762 = vmul.f32 %v585, %v734
    %v763 = vmul.f32 %v589, %v734
    %v764 = vmul.f32 %v593, %v734
    %v765 = vmul.f32 %v597, %v734
    %v766 = vmul.f32 %v601, %v734
    %v767 = vmul.f32 %v605, %v734
    %v768 = vmul.f32 %v609, %v734
    %v769 = vmul.f32 %v613, %v734
    %v770 = vmul.f32 %v617, %v734
    %v771 = vmul.f32 %v621, %v734
    %v772 = vmul.f32 %v625, %v734
    %v773 = vmul.f32 %v629, %v734
    %v774 = vmul.f32 %v633, %v734
    %v775 = vmul.f32 %v637, %v734
    %v776 = vmul.f32 %v641, %v734
    %v777 = vmul.f32 %v645, %v734
    %v778 = vmul.f32 %v649, %v734
    %v779 = vmul.f32 %v653, %v734
    %v780 = vmul.f32 %v657, %v734
    %v781 = vmul.f32 %v661, %v734
    %v782 = vmul.f32 %v665, %v734
    %v783 = vmul.f32 %v669, %v734
    %v784 = vmul.f32 %v673, %v734
    %v785 = vmul.f32 %v677, %v734
    %v786 = vmul.f32 %v681, %v734
    %v787 = vmul.f32 %v685, %v734
    %v788 = vmul.f32 %v689, %v734
    %v789 = vmul.f32 %v693, %v734
    %v790 = vmul.f32 %v697, %v734
    %v791 = vmul.f32 %v701, %v734
    %v792 = vmul.f32 %v705, %v734
    %v793 = vmul.f32 %v709, %v734
    %v794 = vmul.f32 %v713, %v734
    %v795 = vmul.f32 %v717, %v734
    %v796 = vmul.f32 %v721, %v734
    %v797 = vmul.f32 %v725, %v734
    %v798 = vmul.f32 %v729, %v734
    %v799 = vadd.f32 %v410, %v735
    %v800 = vadd.f32 %v411, %v736
    %v801 = vadd.f32 %v412, %v737
    %v802 = vadd.f32 %v413, %v738
    %v803 = vadd.f32 %v414, %v739
    %v804 = vadd.f32 %v415, %v740
    %v805 = vadd.f32 %v416, %v741
    %v806 = vadd.f32 %v417, %v742
    %v807 = vadd.f32 %v418, %v743
    %v808 = vadd.f32 %v419, %v744
    %v809 = vadd.f32 %v420, %v745
    %v810 = vadd.f32 %v421, %v746
    %v811 = vadd.f32 %v422, %v747
    %v812 = vadd.f32 %v423, %v748
    %v813 = vadd.f32 %v424, %v749
    %v814 = vadd.f32 %v425, %v750
    %v815 = vadd.f32 %v426, %v751
    %v816 = vadd.f32 %v427, %v752
    %v817 = vadd.f32 %v428, %v753
    %v818 = vadd.f32 %v429, %v754
    %v819 = vadd.f32 %v430, %v755
    %v820 = vadd.f32 %v431, %v756
    %v821 = vadd.f32 %v432, %v757
    %v822 = vadd.f32 %v433, %v758
    %v823 = vadd.f32 %v434, %v759
    %v824 = vadd.f32 %v435, %v760
    %v825 = vadd.f32 %v436, %v761
    %v826 = vadd.f32 %v437, %v762
    %v827 = vadd.f32 %v438, %v763
    %v828 = vadd.f32 %v439, %v764
    %v829 = vadd.f32 %v440, %v765
    %v830 = vadd.f32 %v441, %v766
    %v831 = vadd.f32 %v442, %v767
    %v832 = vadd.f32 %v443, %v768
    %v833 = vadd.f32 %v444, %v769
    %v834 = vadd.f32 %v445, %v770
    %v835 = vadd.f32 %v446, %v771
    %v836 = vadd.f32 %v447, %v772
    %v837 = vadd.f32 %v448, %v773
    %v838 = vadd.f32 %v449, %v774
    %v839 = vadd.f32 %v450, %v775
    %v840 = vadd.f32 %v451, %v776
    %v841 = vadd.f32 %v452, %v777
    %v842 = vadd.f32 %v453, %v778
    %v843 = vadd.f32 %v454, %v779
    %v844 = vadd.f32 %v455, %v780
    %v845 = vadd.f32 %v456, %v781
    %v846 = vadd.f32 %v457, %v782
    %v847 = vadd.f32 %v458, %v783
    %v848 = vadd.f32 %v459, %v784
    %v849 = vadd.f32 %v460, %v785
    %v850 = vadd.f32 %v461, %v786
    %v851 = vadd.f32 %v462, %v787
    %v852 = vadd.f32 %v463, %v788
    %v853 = vadd.f32 %v464, %v789
    %v854 = vadd.f32 %v465, %v790
    %v855 = vadd.f32 %v466, %v791
    %v856 = vadd.f32 %v467, %v792
    %v857 = vadd.f32 %v468, %v793
    %v858 = vadd.f32 %v469, %v794
    %v859 = vadd.f32 %v470, %v795
    %v860 = vadd.f32 %v471, %v796
    %v861 = vadd.f32 %v472, %v797
    %v862 = vadd.f32 %v473, %v798
    %v863 = vld [vmem:[%s1 + $0x2] sm:$0x1]
    %864 = vset.pattern.permute.xlu0 2
    %865 = vperm.xlu0 %864, %v21
    %v866 = vpop.permute.xlu0 %865
    %868 = vset.pattern.permute.xlu0 2
    %869 = vperm.xlu0 %868, %v22
    %v870 = vpop.permute.xlu0 %869
    %872 = vset.pattern.permute.xlu0 2
    %873 = vperm.xlu0 %872, %v23
    %v874 = vpop.permute.xlu0 %873
    %876 = vset.pattern.permute.xlu0 2
    %877 = vperm.xlu0 %876, %v24
    %v878 = vpop.permute.xlu0 %877
    %880 = vset.pattern.permute.xlu0 2
    %881 = vperm.xlu0 %880, %v25
    %v882 = vpop.permute.xlu0 %881
    %884 = vset.pattern.permute.xlu0 2
    %885 = vperm.xlu0 %884, %v26
    %v886 = vpop.permute.xlu0 %885
    %888 = vset.pattern.permute.xlu0 2
    %889 = vperm.xlu0 %888, %v27
    %v890 = vpop.permute.xlu0 %889
    %892 = vset.pattern.permute.xlu0 2
    %893 = vperm.xlu0 %892, %v28
    %v894 = vpop.permute.xlu0 %893
    %896 = vset.pattern.permute.xlu0 2
    %897 = vperm.xlu0 %896, %v29
    %v898 = vpop.permute.xlu0 %897
    %900 = vset.pattern.permute.xlu0 2
    %901 = vperm.xlu0 %900, %v30
    %v902 = vpop.permute.xlu0 %901
    %904 = vset.pattern.permute.xlu0 2
    %905 = vperm.xlu0 %904, %v31
    %v906 = vpop.permute.xlu0 %905
    %908 = vset.pattern.permute.xlu0 2
    %909 = vperm.xlu0 %908, %v32
    %v910 = vpop.permute.xlu0 %909
    %912 = vset.pattern.permute.xlu0 2
    %913 = vperm.xlu0 %912, %v33
    %v914 = vpop.permute.xlu0 %913
    %916 = vset.pattern.permute.xlu0 2
    %917 = vperm.xlu0 %916, %v34
    %v918 = vpop.permute.xlu0 %917
    %920 = vset.pattern.permute.xlu0 2
    %921 = vperm.xlu0 %920, %v35
    %v922 = vpop.permute.xlu0 %921
    %924 = vset.pattern.permute.xlu0 2
    %925 = vperm.xlu0 %924, %v36
    %v926 = vpop.permute.xlu0 %925
    %928 = vset.pattern.permute.xlu0 2
    %929 = vperm.xlu0 %928, %v37
    %v930 = vpop.permute.xlu0 %929
    %932 = vset.pattern.permute.xlu0 2
    %933 = vperm.xlu0 %932, %v38
    %v934 = vpop.permute.xlu0 %933
    %936 = vset.pattern.permute.xlu0 2
    %937 = vperm.xlu0 %936, %v39
    %v938 = vpop.permute.xlu0 %937
    %940 = vset.pattern.permute.xlu0 2
    %941 = vperm.xlu0 %940, %v40
    %v942 = vpop.permute.xlu0 %941
    %944 = vset.pattern.permute.xlu0 2
    %945 = vperm.xlu0 %944, %v41
    %v946 = vpop.permute.xlu0 %945
    %948 = vset.pattern.permute.xlu0 2
    %949 = vperm.xlu0 %948, %v42
    %v950 = vpop.permute.xlu0 %949
    %952 = vset.pattern.permute.xlu0 2
    %953 = vperm.xlu0 %952, %v43
    %v954 = vpop.permute.xlu0 %953
    %956 = vset.pattern.permute.xlu0 2
    %957 = vperm.xlu0 %956, %v44
    %v958 = vpop.permute.xlu0 %957
    %960 = vset.pattern.permute.xlu0 2
    %961 = vperm.xlu0 %960, %v45
    %v962 = vpop.permute.xlu0 %961
    %964 = vset.pattern.permute.xlu0 2
    %965 = vperm.xlu0 %964, %v46
    %v966 = vpop.permute.xlu0 %965
    %968 = vset.pattern.permute.xlu0 2
    %969 = vperm.xlu0 %968, %v47
    %v970 = vpop.permute.xlu0 %969
    %972 = vset.pattern.permute.xlu0 2
    %973 = vperm.xlu0 %972, %v48
    %v974 = vpop.permute.xlu0 %973
    %976 = vset.pattern.permute.xlu0 2
    %977 = vperm.xlu0 %976, %v49
    %v978 = vpop.permute.xlu0 %977
    %980 = vset.pattern.permute.xlu0 2
    %981 = vperm.xlu0 %980, %v50
    %v982 = vpop.permute.xlu0 %981
    %984 = vset.pattern.permute.xlu0 2
    %985 = vperm.xlu0 %984, %v51
    %v986 = vpop.permute.xlu0 %985
    %988 = vset.pattern.permute.xlu0 2
    %989 = vperm.xlu0 %988, %v52
    %v990 = vpop.permute.xlu0 %989
    %992 = vset.pattern.permute.xlu0 2
    %993 = vperm.xlu0 %992, %v53
    %v994 = vpop.permute.xlu0 %993
    %996 = vset.pattern.permute.xlu0 2
    %997 = vperm.xlu0 %996, %v54
    %v998 = vpop.permute.xlu0 %997
    %1000 = vset.pattern.permute.xlu0 2
    %1001 = vperm.xlu0 %1000, %v55
    %v1002 = vpop.permute.xlu0 %1001
    %1004 = vset.pattern.permute.xlu0 2
    %1005 = vperm.xlu0 %1004, %v56
    %v1006 = vpop.permute.xlu0 %1005
    %1008 = vset.pattern.permute.xlu0 2
    %1009 = vperm.xlu0 %1008, %v57
    %v1010 = vpop.permute.xlu0 %1009
    %1012 = vset.pattern.permute.xlu0 2
    %1013 = vperm.xlu0 %1012, %v58
    %v1014 = vpop.permute.xlu0 %1013
    %1016 = vset.pattern.permute.xlu0 2
    %1017 = vperm.xlu0 %1016, %v59
    %v1018 = vpop.permute.xlu0 %1017
    %1020 = vset.pattern.permute.xlu0 2
    %1021 = vperm.xlu0 %1020, %v60
    %v1022 = vpop.permute.xlu0 %1021
    %1024 = vset.pattern.permute.xlu0 2
    %1025 = vperm.xlu0 %1024, %v61
    %v1026 = vpop.permute.xlu0 %1025
    %1028 = vset.pattern.permute.xlu0 2
    %1029 = vperm.xlu0 %1028, %v62
    %v1030 = vpop.permute.xlu0 %1029
    %1032 = vset.pattern.permute.xlu0 2
    %1033 = vperm.xlu0 %1032, %v63
    %v1034 = vpop.permute.xlu0 %1033
    %1036 = vset.pattern.permute.xlu0 2
    %1037 = vperm.xlu0 %1036, %v64
    %v1038 = vpop.permute.xlu0 %1037
    %1040 = vset.pattern.permute.xlu0 2
    %1041 = vperm.xlu0 %1040, %v65
    %v1042 = vpop.permute.xlu0 %1041
    %1044 = vset.pattern.permute.xlu0 2
    %1045 = vperm.xlu0 %1044, %v66
    %v1046 = vpop.permute.xlu0 %1045
    %1048 = vset.pattern.permute.xlu0 2
    %1049 = vperm.xlu0 %1048, %v67
    %v1050 = vpop.permute.xlu0 %1049
    %1052 = vset.pattern.permute.xlu0 2
    %1053 = vperm.xlu0 %1052, %v68
    %v1054 = vpop.permute.xlu0 %1053
    %1056 = vset.pattern.permute.xlu0 2
    %1057 = vperm.xlu0 %1056, %v69
    %v1058 = vpop.permute.xlu0 %1057
    %1060 = vset.pattern.permute.xlu0 2
    %1061 = vperm.xlu0 %1060, %v70
    %v1062 = vpop.permute.xlu0 %1061
    %1064 = vset.pattern.permute.xlu0 2
    %1065 = vperm.xlu0 %1064, %v71
    %v1066 = vpop.permute.xlu0 %1065
    %1068 = vset.pattern.permute.xlu0 2
    %1069 = vperm.xlu0 %1068, %v72
    %v1070 = vpop.permute.xlu0 %1069
    %1072 = vset.pattern.permute.xlu0 2
    %1073 = vperm.xlu0 %1072, %v73
    %v1074 = vpop.permute.xlu0 %1073
    %1076 = vset.pattern.permute.xlu0 2
    %1077 = vperm.xlu0 %1076, %v74
    %v1078 = vpop.permute.xlu0 %1077
    %1080 = vset.pattern.permute.xlu0 2
    %1081 = vperm.xlu0 %1080, %v75
    %v1082 = vpop.permute.xlu0 %1081
    %1084 = vset.pattern.permute.xlu0 2
    %1085 = vperm.xlu0 %1084, %v76
    %v1086 = vpop.permute.xlu0 %1085
    %1088 = vset.pattern.permute.xlu0 2
    %1089 = vperm.xlu0 %1088, %v77
    %v1090 = vpop.permute.xlu0 %1089
    %1092 = vset.pattern.permute.xlu0 2
    %1093 = vperm.xlu0 %1092, %v78
    %v1094 = vpop.permute.xlu0 %1093
    %1096 = vset.pattern.permute.xlu0 2
    %1097 = vperm.xlu0 %1096, %v79
    %v1098 = vpop.permute.xlu0 %1097
    %1100 = vset.pattern.permute.xlu0 2
    %1101 = vperm.xlu0 %1100, %v80
    %v1102 = vpop.permute.xlu0 %1101
    %1104 = vset.pattern.permute.xlu0 2
    %1105 = vperm.xlu0 %1104, %v81
    %v1106 = vpop.permute.xlu0 %1105
    %1108 = vset.pattern.permute.xlu0 2
    %1109 = vperm.xlu0 %1108, %v82
    %v1110 = vpop.permute.xlu0 %1109
    %1112 = vset.pattern.permute.xlu0 2
    %1113 = vperm.xlu0 %1112, %v83
    %v1114 = vpop.permute.xlu0 %1113
    %1116 = vset.pattern.permute.xlu0 2
    %1117 = vperm.xlu0 %1116, %v84
    %v1118 = vpop.permute.xlu0 %1117
    %v1120 = vlaneseq
    %v1121 = vshrl.u32 %v1120, 7
    %v1122 = vsub.s32 0, %v1121
    %v1123 = vrot.slane %v863, %v1122
    %v1124 = vmul.f32 %v866, %v1123
    %v1125 = vmul.f32 %v870, %v1123
    %v1126 = vmul.f32 %v874, %v1123
    %v1127 = vmul.f32 %v878, %v1123
    %v1128 = vmul.f32 %v882, %v1123
    %v1129 = vmul.f32 %v886, %v1123
    %v1130 = vmul.f32 %v890, %v1123
    %v1131 = vmul.f32 %v894, %v1123
    %v1132 = vmul.f32 %v898, %v1123
    %v1133 = vmul.f32 %v902, %v1123
    %v1134 = vmul.f32 %v906, %v1123
    %v1135 = vmul.f32 %v910, %v1123
    %v1136 = vmul.f32 %v914, %v1123
    %v1137 = vmul.f32 %v918, %v1123
    %v1138 = vmul.f32 %v922, %v1123
    %v1139 = vmul.f32 %v926, %v1123
    %v1140 = vmul.f32 %v930, %v1123
    %v1141 = vmul.f32 %v934, %v1123
    %v1142 = vmul.f32 %v938, %v1123
    %v1143 = vmul.f32 %v942, %v1123
    %v1144 = vmul.f32 %v946, %v1123
    %v1145 = vmul.f32 %v950, %v1123
    %v1146 = vmul.f32 %v954, %v1123
    %v1147 = vmul.f32 %v958, %v1123
    %v1148 = vmul.f32 %v962, %v1123
    %v1149 = vmul.f32 %v966, %v1123
    %v1150 = vmul.f32 %v970, %v1123
    %v1151 = vmul.f32 %v974, %v1123
    %v1152 = vmul.f32 %v978, %v1123
    %v1153 = vmul.f32 %v982, %v1123
    %v1154 = vmul.f32 %v986, %v1123
    %v1155 = vmul.f32 %v990, %v1123
    %v1156 = vmul.f32 %v994, %v1123
    %v1157 = vmul.f32 %v998, %v1123
    %v1158 = vmul.f32 %v1002, %v1123
    %v1159 = vmul.f32 %v1006, %v1123
    %v1160 = vmul.f32 %v1010, %v1123
    %v1161 = vmul.f32 %v1014, %v1123
    %v1162 = vmul.f32 %v1018, %v1123
    %v1163 = vmul.f32 %v1022, %v1123
    %v1164 = vmul.f32 %v1026, %v1123
    %v1165 = vmul.f32 %v1030, %v1123
    %v1166 = vmul.f32 %v1034, %v1123
    %v1167 = vmul.f32 %v1038, %v1123
    %v1168 = vmul.f32 %v1042, %v1123
    %v1169 = vmul.f32 %v1046, %v1123
    %v1170 = vmul.f32 %v1050, %v1123
    %v1171 = vmul.f32 %v1054, %v1123
    %v1172 = vmul.f32 %v1058, %v1123
    %v1173 = vmul.f32 %v1062, %v1123
    %v1174 = vmul.f32 %v1066, %v1123
    %v1175 = vmul.f32 %v1070, %v1123
    %v1176 = vmul.f32 %v1074, %v1123
    %v1177 = vmul.f32 %v1078, %v1123
    %v1178 = vmul.f32 %v1082, %v1123
    %v1179 = vmul.f32 %v1086, %v1123
    %v1180 = vmul.f32 %v1090, %v1123
    %v1181 = vmul.f32 %v1094, %v1123
    %v1182 = vmul.f32 %v1098, %v1123
    %v1183 = vmul.f32 %v1102, %v1123
    %v1184 = vmul.f32 %v1106, %v1123
    %v1185 = vmul.f32 %v1110, %v1123
    %v1186 = vmul.f32 %v1114, %v1123
    %v1187 = vmul.f32 %v1118, %v1123
    %v1188 = vadd.f32 %v799, %v1124
    %v1189 = vadd.f32 %v800, %v1125
    %v1190 = vadd.f32 %v801, %v1126
    %v1191 = vadd.f32 %v802, %v1127
    %v1192 = vadd.f32 %v803, %v1128
    %v1193 = vadd.f32 %v804, %v1129
    %v1194 = vadd.f32 %v805, %v1130
    %v1195 = vadd.f32 %v806, %v1131
    %v1196 = vadd.f32 %v807, %v1132
    %v1197 = vadd.f32 %v808, %v1133
    %v1198 = vadd.f32 %v809, %v1134
    %v1199 = vadd.f32 %v810, %v1135
    %v1200 = vadd.f32 %v811, %v1136
    %v1201 = vadd.f32 %v812, %v1137
    %v1202 = vadd.f32 %v813, %v1138
    %v1203 = vadd.f32 %v814, %v1139
    %v1204 = vadd.f32 %v815, %v1140
    %v1205 = vadd.f32 %v816, %v1141
    %v1206 = vadd.f32 %v817, %v1142
    %v1207 = vadd.f32 %v818, %v1143
    %v1208 = vadd.f32 %v819, %v1144
    %v1209 = vadd.f32 %v820, %v1145
    %v1210 = vadd.f32 %v821, %v1146
    %v1211 = vadd.f32 %v822, %v1147
    %v1212 = vadd.f32 %v823, %v1148
    %v1213 = vadd.f32 %v824, %v1149
    %v1214 = vadd.f32 %v825, %v1150
    %v1215 = vadd.f32 %v826, %v1151
    %v1216 = vadd.f32 %v827, %v1152
    %v1217 = vadd.f32 %v828, %v1153
    %v1218 = vadd.f32 %v829, %v1154
    %v1219 = vadd.f32 %v830, %v1155
    %v1220 = vadd.f32 %v831, %v1156
    %v1221 = vadd.f32 %v832, %v1157
    %v1222 = vadd.f32 %v833, %v1158
    %v1223 = vadd.f32 %v834, %v1159
    %v1224 = vadd.f32 %v835, %v1160
    %v1225 = vadd.f32 %v836, %v1161
    %v1226 = vadd.f32 %v837, %v1162
    %v1227 = vadd.f32 %v838, %v1163
    %v1228 = vadd.f32 %v839, %v1164
    %v1229 = vadd.f32 %v840, %v1165
    %v1230 = vadd.f32 %v841, %v1166
    %v1231 = vadd.f32 %v842, %v1167
    %v1232 = vadd.f32 %v843, %v1168
    %v1233 = vadd.f32 %v844, %v1169
    %v1234 = vadd.f32 %v845, %v1170
    %v1235 = vadd.f32 %v846, %v1171
    %v1236 = vadd.f32 %v847, %v1172
    %v1237 = vadd.f32 %v848, %v1173
    %v1238 = vadd.f32 %v849, %v1174
    %v1239 = vadd.f32 %v850, %v1175
    %v1240 = vadd.f32 %v851, %v1176
    %v1241 = vadd.f32 %v852, %v1177
    %v1242 = vadd.f32 %v853, %v1178
    %v1243 = vadd.f32 %v854, %v1179
    %v1244 = vadd.f32 %v855, %v1180
    %v1245 = vadd.f32 %v856, %v1181
    %v1246 = vadd.f32 %v857, %v1182
    %v1247 = vadd.f32 %v858, %v1183
    %v1248 = vadd.f32 %v859, %v1184
    %v1249 = vadd.f32 %v860, %v1185
    %v1250 = vadd.f32 %v861, %v1186
    %v1251 = vadd.f32 %v862, %v1187
    %v1252 = vld [vmem:[%s1 + $0x3] sm:$0x1]
    %1253 = vset.pattern.permute.xlu0 3
    %1254 = vperm.xlu0 %1253, %v21
    %v1255 = vpop.permute.xlu0 %1254
    %1257 = vset.pattern.permute.xlu0 3
    %1258 = vperm.xlu0 %1257, %v22
    %v1259 = vpop.permute.xlu0 %1258
    %1261 = vset.pattern.permute.xlu0 3
    %1262 = vperm.xlu0 %1261, %v23
    %v1263 = vpop.permute.xlu0 %1262
    %1265 = vset.pattern.permute.xlu0 3
    %1266 = vperm.xlu0 %1265, %v24
    %v1267 = vpop.permute.xlu0 %1266
    %1269 = vset.pattern.permute.xlu0 3
    %1270 = vperm.xlu0 %1269, %v25
    %v1271 = vpop.permute.xlu0 %1270
    %1273 = vset.pattern.permute.xlu0 3
    %1274 = vperm.xlu0 %1273, %v26
    %v1275 = vpop.permute.xlu0 %1274
    %1277 = vset.pattern.permute.xlu0 3
    %1278 = vperm.xlu0 %1277, %v27
    %v1279 = vpop.permute.xlu0 %1278
    %1281 = vset.pattern.permute.xlu0 3
    %1282 = vperm.xlu0 %1281, %v28
    %v1283 = vpop.permute.xlu0 %1282
    %1285 = vset.pattern.permute.xlu0 3
    %1286 = vperm.xlu0 %1285, %v29
    %v1287 = vpop.permute.xlu0 %1286
    %1289 = vset.pattern.permute.xlu0 3
    %1290 = vperm.xlu0 %1289, %v30
    %v1291 = vpop.permute.xlu0 %1290
    %1293 = vset.pattern.permute.xlu0 3
    %1294 = vperm.xlu0 %1293, %v31
    %v1295 = vpop.permute.xlu0 %1294
    %1297 = vset.pattern.permute.xlu0 3
    %1298 = vperm.xlu0 %1297, %v32
    %v1299 = vpop.permute.xlu0 %1298
    %1301 = vset.pattern.permute.xlu0 3
    %1302 = vperm.xlu0 %1301, %v33
    %v1303 = vpop.permute.xlu0 %1302
    %1305 = vset.pattern.permute.xlu0 3
    %1306 = vperm.xlu0 %1305, %v34
    %v1307 = vpop.permute.xlu0 %1306
    %1309 = vset.pattern.permute.xlu0 3
    %1310 = vperm.xlu0 %1309, %v35
    %v1311 = vpop.permute.xlu0 %1310
    %1313 = vset.pattern.permute.xlu0 3
    %1314 = vperm.xlu0 %1313, %v36
    %v1315 = vpop.permute.xlu0 %1314
    %1317 = vset.pattern.permute.xlu0 3
    %1318 = vperm.xlu0 %1317, %v37
    %v1319 = vpop.permute.xlu0 %1318
    %1321 = vset.pattern.permute.xlu0 3
    %1322 = vperm.xlu0 %1321, %v38
    %v1323 = vpop.permute.xlu0 %1322
    %1325 = vset.pattern.permute.xlu0 3
    %1326 = vperm.xlu0 %1325, %v39
    %v1327 = vpop.permute.xlu0 %1326
    %1329 = vset.pattern.permute.xlu0 3
    %1330 = vperm.xlu0 %1329, %v40
    %v1331 = vpop.permute.xlu0 %1330
    %1333 = vset.pattern.permute.xlu0 3
    %1334 = vperm.xlu0 %1333, %v41
    %v1335 = vpop.permute.xlu0 %1334
    %1337 = vset.pattern.permute.xlu0 3
    %1338 = vperm.xlu0 %1337, %v42
    %v1339 = vpop.permute.xlu0 %1338
    %1341 = vset.pattern.permute.xlu0 3
    %1342 = vperm.xlu0 %1341, %v43
    %v1343 = vpop.permute.xlu0 %1342
    %1345 = vset.pattern.permute.xlu0 3
    %1346 = vperm.xlu0 %1345, %v44
    %v1347 = vpop.permute.xlu0 %1346
    %1349 = vset.pattern.permute.xlu0 3
    %1350 = vperm.xlu0 %1349, %v45
    %v1351 = vpop.permute.xlu0 %1350
    %1353 = vset.pattern.permute.xlu0 3
    %1354 = vperm.xlu0 %1353, %v46
    %v1355 = vpop.permute.xlu0 %1354
    %1357 = vset.pattern.permute.xlu0 3
    %1358 = vperm.xlu0 %1357, %v47
    %v1359 = vpop.permute.xlu0 %1358
    %1361 = vset.pattern.permute.xlu0 3
    %1362 = vperm.xlu0 %1361, %v48
    %v1363 = vpop.permute.xlu0 %1362
    %1365 = vset.pattern.permute.xlu0 3
    %1366 = vperm.xlu0 %1365, %v49
    %v1367 = vpop.permute.xlu0 %1366
    %1369 = vset.pattern.permute.xlu0 3
    %1370 = vperm.xlu0 %1369, %v50
    %v1371 = vpop.permute.xlu0 %1370
    %1373 = vset.pattern.permute.xlu0 3
    %1374 = vperm.xlu0 %1373, %v51
    %v1375 = vpop.permute.xlu0 %1374
    %1377 = vset.pattern.permute.xlu0 3
    %1378 = vperm.xlu0 %1377, %v52
    %v1379 = vpop.permute.xlu0 %1378
    %1381 = vset.pattern.permute.xlu0 3
    %1382 = vperm.xlu0 %1381, %v53
    %v1383 = vpop.permute.xlu0 %1382
    %1385 = vset.pattern.permute.xlu0 3
    %1386 = vperm.xlu0 %1385, %v54
    %v1387 = vpop.permute.xlu0 %1386
    %1389 = vset.pattern.permute.xlu0 3
    %1390 = vperm.xlu0 %1389, %v55
    %v1391 = vpop.permute.xlu0 %1390
    %1393 = vset.pattern.permute.xlu0 3
    %1394 = vperm.xlu0 %1393, %v56
    %v1395 = vpop.permute.xlu0 %1394
    %1397 = vset.pattern.permute.xlu0 3
    %1398 = vperm.xlu0 %1397, %v57
    %v1399 = vpop.permute.xlu0 %1398
    %1401 = vset.pattern.permute.xlu0 3
    %1402 = vperm.xlu0 %1401, %v58
    %v1403 = vpop.permute.xlu0 %1402
    %1405 = vset.pattern.permute.xlu0 3
    %1406 = vperm.xlu0 %1405, %v59
    %v1407 = vpop.permute.xlu0 %1406
    %1409 = vset.pattern.permute.xlu0 3
    %1410 = vperm.xlu0 %1409, %v60
    %v1411 = vpop.permute.xlu0 %1410
    %1413 = vset.pattern.permute.xlu0 3
    %1414 = vperm.xlu0 %1413, %v61
    %v1415 = vpop.permute.xlu0 %1414
    %1417 = vset.pattern.permute.xlu0 3
    %1418 = vperm.xlu0 %1417, %v62
    %v1419 = vpop.permute.xlu0 %1418
    %1421 = vset.pattern.permute.xlu0 3
    %1422 = vperm.xlu0 %1421, %v63
    %v1423 = vpop.permute.xlu0 %1422
    %1425 = vset.pattern.permute.xlu0 3
    %1426 = vperm.xlu0 %1425, %v64
    %v1427 = vpop.permute.xlu0 %1426
    %1429 = vset.pattern.permute.xlu0 3
    %1430 = vperm.xlu0 %1429, %v65
    %v1431 = vpop.permute.xlu0 %1430
    %1433 = vset.pattern.permute.xlu0 3
    %1434 = vperm.xlu0 %1433, %v66
    %v1435 = vpop.permute.xlu0 %1434
    %1437 = vset.pattern.permute.xlu0 3
    %1438 = vperm.xlu0 %1437, %v67
    %v1439 = vpop.permute.xlu0 %1438
    %1441 = vset.pattern.permute.xlu0 3
    %1442 = vperm.xlu0 %1441, %v68
    %v1443 = vpop.permute.xlu0 %1442
    %1445 = vset.pattern.permute.xlu0 3
    %1446 = vperm.xlu0 %1445, %v69
    %v1447 = vpop.permute.xlu0 %1446
    %1449 = vset.pattern.permute.xlu0 3
    %1450 = vperm.xlu0 %1449, %v70
    %v1451 = vpop.permute.xlu0 %1450
    %1453 = vset.pattern.permute.xlu0 3
    %1454 = vperm.xlu0 %1453, %v71
    %v1455 = vpop.permute.xlu0 %1454
    %1457 = vset.pattern.permute.xlu0 3
    %1458 = vperm.xlu0 %1457, %v72
    %v1459 = vpop.permute.xlu0 %1458
    %1461 = vset.pattern.permute.xlu0 3
    %1462 = vperm.xlu0 %1461, %v73
    %v1463 = vpop.permute.xlu0 %1462
    %1465 = vset.pattern.permute.xlu0 3
    %1466 = vperm.xlu0 %1465, %v74
    %v1467 = vpop.permute.xlu0 %1466
    %1469 = vset.pattern.permute.xlu0 3
    %1470 = vperm.xlu0 %1469, %v75
    %v1471 = vpop.permute.xlu0 %1470
    %1473 = vset.pattern.permute.xlu0 3
    %1474 = vperm.xlu0 %1473, %v76
    %v1475 = vpop.permute.xlu0 %1474
    %1477 = vset.pattern.permute.xlu0 3
    %1478 = vperm.xlu0 %1477, %v77
    %v1479 = vpop.permute.xlu0 %1478
    %1481 = vset.pattern.permute.xlu0 3
    %1482 = vperm.xlu0 %1481, %v78
    %v1483 = vpop.permute.xlu0 %1482
    %1485 = vset.pattern.permute.xlu0 3
    %1486 = vperm.xlu0 %1485, %v79
    %v1487 = vpop.permute.xlu0 %1486
    %1489 = vset.pattern.permute.xlu0 3
    %1490 = vperm.xlu0 %1489, %v80
    %v1491 = vpop.permute.xlu0 %1490
    %1493 = vset.pattern.permute.xlu0 3
    %1494 = vperm.xlu0 %1493, %v81
    %v1495 = vpop.permute.xlu0 %1494
    %1497 = vset.pattern.permute.xlu0 3
    %1498 = vperm.xlu0 %1497, %v82
    %v1499 = vpop.permute.xlu0 %1498
    %1501 = vset.pattern.permute.xlu0 3
    %1502 = vperm.xlu0 %1501, %v83
    %v1503 = vpop.permute.xlu0 %1502
    %1505 = vset.pattern.permute.xlu0 3
    %1506 = vperm.xlu0 %1505, %v84
    %v1507 = vpop.permute.xlu0 %1506
    %v1509 = vlaneseq
    %v1510 = vshrl.u32 %v1509, 7
    %v1511 = vsub.s32 0, %v1510
    %v1512 = vrot.slane %v1252, %v1511
    %v1513 = vmul.f32 %v1255, %v1512
    %v1514 = vmul.f32 %v1259, %v1512
    %v1515 = vmul.f32 %v1263, %v1512
    %v1516 = vmul.f32 %v1267, %v1512
    %v1517 = vmul.f32 %v1271, %v1512
    %v1518 = vmul.f32 %v1275, %v1512
    %v1519 = vmul.f32 %v1279, %v1512
    %v1520 = vmul.f32 %v1283, %v1512
    %v1521 = vmul.f32 %v1287, %v1512
    %v1522 = vmul.f32 %v1291, %v1512
    %v1523 = vmul.f32 %v1295, %v1512
    %v1524 = vmul.f32 %v1299, %v1512
    %v1525 = vmul.f32 %v1303, %v1512
    %v1526 = vmul.f32 %v1307, %v1512
    %v1527 = vmul.f32 %v1311, %v1512
    %v1528 = vmul.f32 %v1315, %v1512
    %v1529 = vmul.f32 %v1319, %v1512
    %v1530 = vmul.f32 %v1323, %v1512
    %v1531 = vmul.f32 %v1327, %v1512
    %v1532 = vmul.f32 %v1331, %v1512
    %v1533 = vmul.f32 %v1335, %v1512
    %v1534 = vmul.f32 %v1339, %v1512
    %v1535 = vmul.f32 %v1343, %v1512
    %v1536 = vmul.f32 %v1347, %v1512
    %v1537 = vmul.f32 %v1351, %v1512
    %v1538 = vmul.f32 %v1355, %v1512
    %v1539 = vmul.f32 %v1359, %v1512
    %v1540 = vmul.f32 %v1363, %v1512
    %v1541 = vmul.f32 %v1367, %v1512
    %v1542 = vmul.f32 %v1371, %v1512
    %v1543 = vmul.f32 %v1375, %v1512
    %v1544 = vmul.f32 %v1379, %v1512
    %v1545 = vmul.f32 %v1383, %v1512
    %v1546 = vmul.f32 %v1387, %v1512
    %v1547 = vmul.f32 %v1391, %v1512
    %v1548 = vmul.f32 %v1395, %v1512
    %v1549 = vmul.f32 %v1399, %v1512
    %v1550 = vmul.f32 %v1403, %v1512
    %v1551 = vmul.f32 %v1407, %v1512
    %v1552 = vmul.f32 %v1411, %v1512
    %v1553 = vmul.f32 %v1415, %v1512
    %v1554 = vmul.f32 %v1419, %v1512
    %v1555 = vmul.f32 %v1423, %v1512
    %v1556 = vmul.f32 %v1427, %v1512
    %v1557 = vmul.f32 %v1431, %v1512
    %v1558 = vmul.f32 %v1435, %v1512
    %v1559 = vmul.f32 %v1439, %v1512
    %v1560 = vmul.f32 %v1443, %v1512
    %v1561 = vmul.f32 %v1447, %v1512
    %v1562 = vmul.f32 %v1451, %v1512
    %v1563 = vmul.f32 %v1455, %v1512
    %v1564 = vmul.f32 %v1459, %v1512
    %v1565 = vmul.f32 %v1463, %v1512
    %v1566 = vmul.f32 %v1467, %v1512
    %v1567 = vmul.f32 %v1471, %v1512
    %v1568 = vmul.f32 %v1475, %v1512
    %v1569 = vmul.f32 %v1479, %v1512
    %v1570 = vmul.f32 %v1483, %v1512
    %v1571 = vmul.f32 %v1487, %v1512
    %v1572 = vmul.f32 %v1491, %v1512
    %v1573 = vmul.f32 %v1495, %v1512
    %v1574 = vmul.f32 %v1499, %v1512
    %v1575 = vmul.f32 %v1503, %v1512
    %v1576 = vmul.f32 %v1507, %v1512
    %v1577 = vadd.f32 %v1188, %v1513
    %v1578 = vadd.f32 %v1189, %v1514
    %v1579 = vadd.f32 %v1190, %v1515
    %v1580 = vadd.f32 %v1191, %v1516
    %v1581 = vadd.f32 %v1192, %v1517
    %v1582 = vadd.f32 %v1193, %v1518
    %v1583 = vadd.f32 %v1194, %v1519
    %v1584 = vadd.f32 %v1195, %v1520
    %v1585 = vadd.f32 %v1196, %v1521
    %v1586 = vadd.f32 %v1197, %v1522
    %v1587 = vadd.f32 %v1198, %v1523
    %v1588 = vadd.f32 %v1199, %v1524
    %v1589 = vadd.f32 %v1200, %v1525
    %v1590 = vadd.f32 %v1201, %v1526
    %v1591 = vadd.f32 %v1202, %v1527
    %v1592 = vadd.f32 %v1203, %v1528
    %v1593 = vadd.f32 %v1204, %v1529
    %v1594 = vadd.f32 %v1205, %v1530
    %v1595 = vadd.f32 %v1206, %v1531
    %v1596 = vadd.f32 %v1207, %v1532
    %v1597 = vadd.f32 %v1208, %v1533
    %v1598 = vadd.f32 %v1209, %v1534
    %v1599 = vadd.f32 %v1210, %v1535
    %v1600 = vadd.f32 %v1211, %v1536
    %v1601 = vadd.f32 %v1212, %v1537
    %v1602 = vadd.f32 %v1213, %v1538
    %v1603 = vadd.f32 %v1214, %v1539
    %v1604 = vadd.f32 %v1215, %v1540
    %v1605 = vadd.f32 %v1216, %v1541
    %v1606 = vadd.f32 %v1217, %v1542
    %v1607 = vadd.f32 %v1218, %v1543
    %v1608 = vadd.f32 %v1219, %v1544
    %v1609 = vadd.f32 %v1220, %v1545
    %v1610 = vadd.f32 %v1221, %v1546
    %v1611 = vadd.f32 %v1222, %v1547
    %v1612 = vadd.f32 %v1223, %v1548
    %v1613 = vadd.f32 %v1224, %v1549
    %v1614 = vadd.f32 %v1225, %v1550
    %v1615 = vadd.f32 %v1226, %v1551
    %v1616 = vadd.f32 %v1227, %v1552
    %v1617 = vadd.f32 %v1228, %v1553
    %v1618 = vadd.f32 %v1229, %v1554
    %v1619 = vadd.f32 %v1230, %v1555
    %v1620 = vadd.f32 %v1231, %v1556
    %v1621 = vadd.f32 %v1232, %v1557
    %v1622 = vadd.f32 %v1233, %v1558
    %v1623 = vadd.f32 %v1234, %v1559
    %v1624 = vadd.f32 %v1235, %v1560
    %v1625 = vadd.f32 %v1236, %v1561
    %v1626 = vadd.f32 %v1237, %v1562
    %v1627 = vadd.f32 %v1238, %v1563
    %v1628 = vadd.f32 %v1239, %v1564
    %v1629 = vadd.f32 %v1240, %v1565
    %v1630 = vadd.f32 %v1241, %v1566
    %v1631 = vadd.f32 %v1242, %v1567
    %v1632 = vadd.f32 %v1243, %v1568
    %v1633 = vadd.f32 %v1244, %v1569
    %v1634 = vadd.f32 %v1245, %v1570
    %v1635 = vadd.f32 %v1246, %v1571
    %v1636 = vadd.f32 %v1247, %v1572
    %v1637 = vadd.f32 %v1248, %v1573
    %v1638 = vadd.f32 %v1249, %v1574
    %v1639 = vadd.f32 %v1250, %v1575
    %v1640 = vadd.f32 %v1251, %v1576
    %v1641 = vld [vmem:[%s2] sm:$0x1]
    %v1643 = vlaneseq
    %v1644 = vshrl.u32 %v1643, 7
    %v1645 = vsub.s32 0, %v1644
    %v1646 = vrot.slane %v1641, %v1645
    %v1648 = vadd.f32 %v1577, %v1646
    %v1649 = vadd.f32 %v1578, %v1646
    %v1650 = vadd.f32 %v1579, %v1646
    %v1651 = vadd.f32 %v1580, %v1646
    %v1652 = vadd.f32 %v1581, %v1646
    %v1653 = vadd.f32 %v1582, %v1646
    %v1654 = vadd.f32 %v1583, %v1646
    %v1655 = vadd.f32 %v1584, %v1646
    %v1656 = vadd.f32 %v1585, %v1646
    %v1657 = vadd.f32 %v1586, %v1646
    %v1658 = vadd.f32 %v1587, %v1646
    %v1659 = vadd.f32 %v1588, %v1646
    %v1660 = vadd.f32 %v1589, %v1646
    %v1661 = vadd.f32 %v1590, %v1646
    %v1662 = vadd.f32 %v1591, %v1646
    %v1663 = vadd.f32 %v1592, %v1646
    %v1664 = vadd.f32 %v1593, %v1646
    %v1665 = vadd.f32 %v1594, %v1646
    %v1666 = vadd.f32 %v1595, %v1646
    %v1667 = vadd.f32 %v1596, %v1646
    %v1668 = vadd.f32 %v1597, %v1646
    %v1669 = vadd.f32 %v1598, %v1646
    %v1670 = vadd.f32 %v1599, %v1646
    %v1671 = vadd.f32 %v1600, %v1646
    %v1672 = vadd.f32 %v1601, %v1646
    %v1673 = vadd.f32 %v1602, %v1646
    %v1674 = vadd.f32 %v1603, %v1646
    %v1675 = vadd.f32 %v1604, %v1646
    %v1676 = vadd.f32 %v1605, %v1646
    %v1677 = vadd.f32 %v1606, %v1646
    %v1678 = vadd.f32 %v1607, %v1646
    %v1679 = vadd.f32 %v1608, %v1646
    %v1680 = vadd.f32 %v1609, %v1646
    %v1681 = vadd.f32 %v1610, %v1646
    %v1682 = vadd.f32 %v1611, %v1646
    %v1683 = vadd.f32 %v1612, %v1646
    %v1684 = vadd.f32 %v1613, %v1646
    %v1685 = vadd.f32 %v1614, %v1646
    %v1686 = vadd.f32 %v1615, %v1646
    %v1687 = vadd.f32 %v1616, %v1646
    %v1688 = vadd.f32 %v1617, %v1646
    %v1689 = vadd.f32 %v1618, %v1646
    %v1690 = vadd.f32 %v1619, %v1646
    %v1691 = vadd.f32 %v1620, %v1646
    %v1692 = vadd.f32 %v1621, %v1646
    %v1693 = vadd.f32 %v1622, %v1646
    %v1694 = vadd.f32 %v1623, %v1646
    %v1695 = vadd.f32 %v1624, %v1646
    %v1696 = vadd.f32 %v1625, %v1646
    %v1697 = vadd.f32 %v1626, %v1646
    %v1698 = vadd.f32 %v1627, %v1646
    %v1699 = vadd.f32 %v1628, %v1646
    %v1700 = vadd.f32 %v1629, %v1646
    %v1701 = vadd.f32 %v1630, %v1646
    %v1702 = vadd.f32 %v1631, %v1646
    %v1703 = vadd.f32 %v1632, %v1646
    %v1704 = vadd.f32 %v1633, %v1646
    %v1705 = vadd.f32 %v1634, %v1646
    %v1706 = vadd.f32 %v1635, %v1646
    %v1707 = vadd.f32 %v1636, %v1646
    %v1708 = vadd.f32 %v1637, %v1646
    %v1709 = vadd.f32 %v1638, %v1646
    %v1710 = vadd.f32 %v1639, %v1646
    %v1711 = vadd.f32 %v1640, %v1646
    %vm1712 = vcmp.ge.f32.partialorder %v1648, 0.0
    %vm1713 = vcmp.ge.f32.partialorder %v1649, 0.0
    %vm1714 = vcmp.ge.f32.partialorder %v1650, 0.0
    %vm1715 = vcmp.ge.f32.partialorder %v1651, 0.0
    %vm1716 = vcmp.ge.f32.partialorder %v1652, 0.0
    %vm1717 = vcmp.ge.f32.partialorder %v1653, 0.0
    %vm1718 = vcmp.ge.f32.partialorder %v1654, 0.0
    %vm1719 = vcmp.ge.f32.partialorder %v1655, 0.0
    %vm1720 = vcmp.ge.f32.partialorder %v1656, 0.0
    %vm1721 = vcmp.ge.f32.partialorder %v1657, 0.0
    %vm1722 = vcmp.ge.f32.partialorder %v1658, 0.0
    %vm1723 = vcmp.ge.f32.partialorder %v1659, 0.0
    %vm1724 = vcmp.ge.f32.partialorder %v1660, 0.0
    %vm1725 = vcmp.ge.f32.partialorder %v1661, 0.0
    %vm1726 = vcmp.ge.f32.partialorder %v1662, 0.0
    %vm1727 = vcmp.ge.f32.partialorder %v1663, 0.0
    %vm1728 = vcmp.ge.f32.partialorder %v1664, 0.0
    %vm1729 = vcmp.ge.f32.partialorder %v1665, 0.0
    %vm1730 = vcmp.ge.f32.partialorder %v1666, 0.0
    %vm1731 = vcmp.ge.f32.partialorder %v1667, 0.0
    %vm1732 = vcmp.ge.f32.partialorder %v1668, 0.0
    %vm1733 = vcmp.ge.f32.partialorder %v1669, 0.0
    %vm1734 = vcmp.ge.f32.partialorder %v1670, 0.0
    %vm1735 = vcmp.ge.f32.partialorder %v1671, 0.0
    %vm1736 = vcmp.ge.f32.partialorder %v1672, 0.0
    %vm1737 = vcmp.ge.f32.partialorder %v1673, 0.0
    %vm1738 = vcmp.ge.f32.partialorder %v1674, 0.0
    %vm1739 = vcmp.ge.f32.partialorder %v1675, 0.0
    %vm1740 = vcmp.ge.f32.partialorder %v1676, 0.0
    %vm1741 = vcmp.ge.f32.partialorder %v1677, 0.0
    %vm1742 = vcmp.ge.f32.partialorder %v1678, 0.0
    %vm1743 = vcmp.ge.f32.partialorder %v1679, 0.0
    %vm1744 = vcmp.ge.f32.partialorder %v1680, 0.0
    %vm1745 = vcmp.ge.f32.partialorder %v1681, 0.0
    %vm1746 = vcmp.ge.f32.partialorder %v1682, 0.0
    %vm1747 = vcmp.ge.f32.partialorder %v1683, 0.0
    %vm1748 = vcmp.ge.f32.partialorder %v1684, 0.0
    %vm1749 = vcmp.ge.f32.partialorder %v1685, 0.0
    %vm1750 = vcmp.ge.f32.partialorder %v1686, 0.0
    %vm1751 = vcmp.ge.f32.partialorder %v1687, 0.0
    %vm1752 = vcmp.ge.f32.partialorder %v1688, 0.0
    %vm1753 = vcmp.ge.f32.partialorder %v1689, 0.0
    %vm1754 = vcmp.ge.f32.partialorder %v1690, 0.0
    %vm1755 = vcmp.ge.f32.partialorder %v1691, 0.0
    %vm1756 = vcmp.ge.f32.partialorder %v1692, 0.0
    %vm1757 = vcmp.ge.f32.partialorder %v1693, 0.0
    %vm1758 = vcmp.ge.f32.partialorder %v1694, 0.0
    %vm1759 = vcmp.ge.f32.partialorder %v1695, 0.0
    %vm1760 = vcmp.ge.f32.partialorder %v1696, 0.0
    %vm1761 = vcmp.ge.f32.partialorder %v1697, 0.0
    %vm1762 = vcmp.ge.f32.partialorder %v1698, 0.0
    %vm1763 = vcmp.ge.f32.partialorder %v1699, 0.0
    %vm1764 = vcmp.ge.f32.partialorder %v1700, 0.0
    %vm1765 = vcmp.ge.f32.partialorder %v1701, 0.0
    %vm1766 = vcmp.ge.f32.partialorder %v1702, 0.0
    %vm1767 = vcmp.ge.f32.partialorder %v1703, 0.0
    %vm1768 = vcmp.ge.f32.partialorder %v1704, 0.0
    %vm1769 = vcmp.ge.f32.partialorder %v1705, 0.0
    %vm1770 = vcmp.ge.f32.partialorder %v1706, 0.0
    %vm1771 = vcmp.ge.f32.partialorder %v1707, 0.0
    %vm1772 = vcmp.ge.f32.partialorder %v1708, 0.0
    %vm1773 = vcmp.ge.f32.partialorder %v1709, 0.0
    %vm1774 = vcmp.ge.f32.partialorder %v1710, 0.0
    %vm1775 = vcmp.ge.f32.partialorder %v1711, 0.0
    %v1776 = vmul.f32 %v1648, 0.2
    %v1777 = vmul.f32 %v1649, 0.2
    %v1778 = vmul.f32 %v1650, 0.2
    %v1779 = vmul.f32 %v1651, 0.2
    %v1780 = vmul.f32 %v1652, 0.2
    %v1781 = vmul.f32 %v1653, 0.2
    %v1782 = vmul.f32 %v1654, 0.2
    %v1783 = vmul.f32 %v1655, 0.2
    %v1784 = vmul.f32 %v1656, 0.2
    %v1785 = vmul.f32 %v1657, 0.2
    %v1786 = vmul.f32 %v1658, 0.2
    %v1787 = vmul.f32 %v1659, 0.2
    %v1788 = vmul.f32 %v1660, 0.2
    %v1789 = vmul.f32 %v1661, 0.2
    %v1790 = vmul.f32 %v1662, 0.2
    %v1791 = vmul.f32 %v1663, 0.2
    %v1792 = vmul.f32 %v1664, 0.2
    %v1793 = vmul.f32 %v1665, 0.2
    %v1794 = vmul.f32 %v1666, 0.2
    %v1795 = vmul.f32 %v1667, 0.2
    %v1796 = vmul.f32 %v1668, 0.2
    %v1797 = vmul.f32 %v1669, 0.2
    %v1798 = vmul.f32 %v1670, 0.2
    %v1799 = vmul.f32 %v1671, 0.2
    %v1800 = vmul.f32 %v1672, 0.2
    %v1801 = vmul.f32 %v1673, 0.2
    %v1802 = vmul.f32 %v1674, 0.2
    %v1803 = vmul.f32 %v1675, 0.2
    %v1804 = vmul.f32 %v1676, 0.2
    %v1805 = vmul.f32 %v1677, 0.2
    %v1806 = vmul.f32 %v1678, 0.2
    %v1807 = vmul.f32 %v1679, 0.2
    %v1808 = vmul.f32 %v1680, 0.2
    %v1809 = vmul.f32 %v1681, 0.2
    %v1810 = vmul.f32 %v1682, 0.2
    %v1811 = vmul.f32 %v1683, 0.2
    %v1812 = vmul.f32 %v1684, 0.2
    %v1813 = vmul.f32 %v1685, 0.2
    %v1814 = vmul.f32 %v1686, 0.2
    %v1815 = vmul.f32 %v1687, 0.2
    %v1816 = vmul.f32 %v1688, 0.2
    %v1817 = vmul.f32 %v1689, 0.2
    %v1818 = vmul.f32 %v1690, 0.2
    %v1819 = vmul.f32 %v1691, 0.2
    %v1820 = vmul.f32 %v1692, 0.2
    %v1821 = vmul.f32 %v1693, 0.2
    %v1822 = vmul.f32 %v1694, 0.2
    %v1823 = vmul.f32 %v1695, 0.2
    %v1824 = vmul.f32 %v1696, 0.2
    %v1825 = vmul.f32 %v1697, 0.2
    %v1826 = vmul.f32 %v1698, 0.2
    %v1827 = vmul.f32 %v1699, 0.2
    %v1828 = vmul.f32 %v1700, 0.2
    %v1829 = vmul.f32 %v1701, 0.2
    %v1830 = vmul.f32 %v1702, 0.2
    %v1831 = vmul.f32 %v1703, 0.2
    %v1832 = vmul.f32 %v1704, 0.2
    %v1833 = vmul.f32 %v1705, 0.2
    %v1834 = vmul.f32 %v1706, 0.2
    %v1835 = vmul.f32 %v1707, 0.2
    %v1836 = vmul.f32 %v1708, 0.2
    %v1837 = vmul.f32 %v1709, 0.2
    %v1838 = vmul.f32 %v1710, 0.2
    %v1839 = vmul.f32 %v1711, 0.2
    %v1840 = vsel %vm1712, %v1648, %v1776
    %v1841 = vsel %vm1713, %v1649, %v1777
    %v1842 = vsel %vm1714, %v1650, %v1778
    %v1843 = vsel %vm1715, %v1651, %v1779
    %v1844 = vsel %vm1716, %v1652, %v1780
    %v1845 = vsel %vm1717, %v1653, %v1781
    %v1846 = vsel %vm1718, %v1654, %v1782
    %v1847 = vsel %vm1719, %v1655, %v1783
    %v1848 = vsel %vm1720, %v1656, %v1784
    %v1849 = vsel %vm1721, %v1657, %v1785
    %v1850 = vsel %vm1722, %v1658, %v1786
    %v1851 = vsel %vm1723, %v1659, %v1787
    %v1852 = vsel %vm1724, %v1660, %v1788
    %v1853 = vsel %vm1725, %v1661, %v1789
    %v1854 = vsel %vm1726, %v1662, %v1790
    %v1855 = vsel %vm1727, %v1663, %v1791
    %v1856 = vsel %vm1728, %v1664, %v1792
    %v1857 = vsel %vm1729, %v1665, %v1793
    %v1858 = vsel %vm1730, %v1666, %v1794
    %v1859 = vsel %vm1731, %v1667, %v1795
    %v1860 = vsel %vm1732, %v1668, %v1796
    %v1861 = vsel %vm1733, %v1669, %v1797
    %v1862 = vsel %vm1734, %v1670, %v1798
    %v1863 = vsel %vm1735, %v1671, %v1799
    %v1864 = vsel %vm1736, %v1672, %v1800
    %v1865 = vsel %vm1737, %v1673, %v1801
    %v1866 = vsel %vm1738, %v1674, %v1802
    %v1867 = vsel %vm1739, %v1675, %v1803
    %v1868 = vsel %vm1740, %v1676, %v1804
    %v1869 = vsel %vm1741, %v1677, %v1805
    %v1870 = vsel %vm1742, %v1678, %v1806
    %v1871 = vsel %vm1743, %v1679, %v1807
    %v1872 = vsel %vm1744, %v1680, %v1808
    %v1873 = vsel %vm1745, %v1681, %v1809
    %v1874 = vsel %vm1746, %v1682, %v1810
    %v1875 = vsel %vm1747, %v1683, %v1811
    %v1876 = vsel %vm1748, %v1684, %v1812
    %v1877 = vsel %vm1749, %v1685, %v1813
    %v1878 = vsel %vm1750, %v1686, %v1814
    %v1879 = vsel %vm1751, %v1687, %v1815
    %v1880 = vsel %vm1752, %v1688, %v1816
    %v1881 = vsel %vm1753, %v1689, %v1817
    %v1882 = vsel %vm1754, %v1690, %v1818
    %v1883 = vsel %vm1755, %v1691, %v1819
    %v1884 = vsel %vm1756, %v1692, %v1820
    %v1885 = vsel %vm1757, %v1693, %v1821
    %v1886 = vsel %vm1758, %v1694, %v1822
    %v1887 = vsel %vm1759, %v1695, %v1823
    %v1888 = vsel %vm1760, %v1696, %v1824
    %v1889 = vsel %vm1761, %v1697, %v1825
    %v1890 = vsel %vm1762, %v1698, %v1826
    %v1891 = vsel %vm1763, %v1699, %v1827
    %v1892 = vsel %vm1764, %v1700, %v1828
    %v1893 = vsel %vm1765, %v1701, %v1829
    %v1894 = vsel %vm1766, %v1702, %v1830
    %v1895 = vsel %vm1767, %v1703, %v1831
    %v1896 = vsel %vm1768, %v1704, %v1832
    %v1897 = vsel %vm1769, %v1705, %v1833
    %v1898 = vsel %vm1770, %v1706, %v1834
    %v1899 = vsel %vm1771, %v1707, %v1835
    %v1900 = vsel %vm1772, %v1708, %v1836
    %v1901 = vsel %vm1773, %v1709, %v1837
    %v1902 = vsel %vm1774, %v1710, %v1838
    %v1903 = vsel %vm1775, %v1711, %v1839
    %v1904 = vld [vmem:[%s3] sm:$0xff]
    %v1905 = vld [vmem:[%s3 + $0x8] sm:$0xff]
    %v1906 = vld [vmem:[%s3 + $0x10] sm:$0xff]
    %v1907 = vld [vmem:[%s3 + $0x18] sm:$0xff]
    %v1908 = vld [vmem:[%s3 + $0x20] sm:$0xff]
    %v1909 = vld [vmem:[%s3 + $0x28] sm:$0xff]
    %v1910 = vld [vmem:[%s3 + $0x30] sm:$0xff]
    %v1911 = vld [vmem:[%s3 + $0x38] sm:$0xff]
    %vm1912 = vcmask 523264
    %v1914 = vsel %vm1912, %v1840, 0
    %v1917 = vsel %vm1912, %v1841, 0
    %v1920 = vsel %vm1912, %v1842, 0
    %v1923 = vsel %vm1912, %v1843, 0
    %v1926 = vsel %vm1912, %v1844, 0
    %v1929 = vsel %vm1912, %v1845, 0
    %v1932 = vsel %vm1912, %v1846, 0
    %v1935 = vsel %vm1912, %v1847, 0
    %v1938 = vsel %vm1912, %v1848, 0
    %v1941 = vsel %vm1912, %v1849, 0
    %v1944 = vsel %vm1912, %v1850, 0
    %v1947 = vsel %vm1912, %v1851, 0
    %v1950 = vsel %vm1912, %v1852, 0
    %v1953 = vsel %vm1912, %v1853, 0
    %v1956 = vsel %vm1912, %v1854, 0
    %v1959 = vsel %vm1912, %v1855, 0
    %v1962 = vsel %vm1912, %v1856, 0
    %v1965 = vsel %vm1912, %v1857, 0
    %v1968 = vsel %vm1912, %v1858, 0
    %v1971 = vsel %vm1912, %v1859, 0
    %v1974 = vsel %vm1912, %v1860, 0
    %v1977 = vsel %vm1912, %v1861, 0
    %v1980 = vsel %vm1912, %v1862, 0
    %v1983 = vsel %vm1912, %v1863, 0
    %v1986 = vsel %vm1912, %v1864, 0
    %v1989 = vsel %vm1912, %v1865, 0
    %v1992 = vsel %vm1912, %v1866, 0
    %v1995 = vsel %vm1912, %v1867, 0
    %v1998 = vsel %vm1912, %v1868, 0
    %v2001 = vsel %vm1912, %v1869, 0
    %v2004 = vsel %vm1912, %v1870, 0
    %v2007 = vsel %vm1912, %v1871, 0
    %v2010 = vsel %vm1912, %v1872, 0
    %v2013 = vsel %vm1912, %v1873, 0
    %v2016 = vsel %vm1912, %v1874, 0
    %v2019 = vsel %vm1912, %v1875, 0
    %v2022 = vsel %vm1912, %v1876, 0
    %v2025 = vsel %vm1912, %v1877, 0
    %v2028 = vsel %vm1912, %v1878, 0
    %v2031 = vsel %vm1912, %v1879, 0
    %v2034 = vsel %vm1912, %v1880, 0
    %v2037 = vsel %vm1912, %v1881, 0
    %v2040 = vsel %vm1912, %v1882, 0
    %v2043 = vsel %vm1912, %v1883, 0
    %v2046 = vsel %vm1912, %v1884, 0
    %v2049 = vsel %vm1912, %v1885, 0
    %v2052 = vsel %vm1912, %v1886, 0
    %v2055 = vsel %vm1912, %v1887, 0
    %v2058 = vsel %vm1912, %v1888, 0
    %v2061 = vsel %vm1912, %v1889, 0
    %v2064 = vsel %vm1912, %v1890, 0
    %v2067 = vsel %vm1912, %v1891, 0
    %v2070 = vsel %vm1912, %v1892, 0
    %v2073 = vsel %vm1912, %v1893, 0
    %v2076 = vsel %vm1912, %v1894, 0
    %v2079 = vsel %vm1912, %v1895, 0
    %v2082 = vsel %vm1912, %v1896, 0
    %v2085 = vsel %vm1912, %v1897, 0
    %v2088 = vsel %vm1912, %v1898, 0
    %v2091 = vsel %vm1912, %v1899, 0
    %v2094 = vsel %vm1912, %v1900, 0
    %v2097 = vsel %vm1912, %v1901, 0
    %v2100 = vsel %vm1912, %v1902, 0
    %v2103 = vsel %vm1912, %v1903, 0
    %2105 = vmatprep.subr.mxu0 0.0
    %2106 = vmatpush1.msra.mxu0 %v1904
    %2107 = vmatprep.subr.mxu0 0.0
    %2108 = vmatpush1.msra.mxu0 %v1905
    %2109 = vmatprep.subr.mxu0 0.0
    %2110 = vmatpush1.msra.mxu0 %v1906
    %2111 = vmatprep.subr.mxu0 0.0
    %2112 = vmatpush1.msra.mxu0 %v1907
    %2113 = vmatprep.subr.mxu0 0.0
    %2114 = vmatpush1.msra.mxu0 %v1908
    %2115 = vmatprep.subr.mxu0 0.0
    %2116 = vmatpush1.msra.mxu0 %v1909
    %2117 = vmatprep.subr.mxu0 0.0
    %2118 = vmatpush1.msra.mxu0 %v1910
    %2119 = vmatprep.subr.mxu0 0.0
    %2120 = vmatpush1.msra.mxu0 %v1911
    %2121 = vmatprep.subr.mxu0 0.0
    %2122 = vmatpush1.msra.mxu0 0.0
    %2123 = vmatprep.subr.mxu0 0.0
    %2124 = vmatpush1.msra.mxu0 0.0
    %2125 = vmatprep.subr.mxu0 0.0
    %2126 = vmatpush1.msra.mxu0 0.0
    %2127 = vmatprep.subr.mxu0 0.0
    %2128 = vmatpush1.msra.mxu0 0.0
    %2129 = vmatprep.subr.mxu0 0.0
    %2130 = vmatpush1.msra.mxu0 0.0
    %2131 = vmatprep.subr.mxu0 0.0
    %2132 = vmatpush1.msra.mxu0 0.0
    %2133 = vmatprep.subr.mxu0 0.0
    %2134 = vmatpush1.msra.mxu0 0.0
    %2135 = vmatprep.subr.mxu0 0.0
    %2136 = vmatpush1.msra.mxu0 0.0
    %2137 = vmatprep.subr.mxu0 0.0
    %2138 = vmatpush1.msra.mxu0 0.0
    %2139 = vmatprep.subr.mxu0 0.0
    %2140 = vmatpush1.msra.mxu0 0.0
    %2141 = vmatprep.subr.mxu0 0.0
    %2142 = vmatpush1.msra.mxu0 0.0
    %2143 = vmatprep.subr.mxu0 0.0
    %2144 = vmatpush1.msra.mxu0 0.0
    %2145 = vmatprep.subr.mxu0 0.0
    %2146 = vmatpush1.msra.mxu0 0.0
    %2147 = vmatprep.subr.mxu0 0.0
    %2148 = vmatpush1.msra.mxu0 0.0
    %2149 = vmatprep.subr.mxu0 0.0
    %2150 = vmatpush1.msra.mxu0 0.0
    %2151 = vmatprep.subr.mxu0 0.0
    %2152 = vmatpush1.msra.mxu0 0.0
    %2153 = vmatprep.subr.mxu0 0.0
    %2154 = vmatpush1.msra.mxu0 0.0
    %2155 = vmatprep.subr.mxu0 0.0
    %2156 = vmatpush1.msra.mxu0 0.0
    %2157 = vmatprep.subr.mxu0 0.0
    %2158 = vmatpush1.msra.mxu0 0.0
    %2159 = vmatprep.subr.mxu0 0.0
    %2160 = vmatpush1.msra.mxu0 0.0
    %2161 = vmatprep.subr.mxu0 0.0
    %2162 = vmatpush1.msra.mxu0 0.0
    %2163 = vmatprep.subr.mxu0 0.0
    %2164 = vmatpush1.msra.mxu0 0.0
    %2165 = vmatprep.subr.mxu0 0.0
    %2166 = vmatpush1.msra.mxu0 0.0
    %2167 = vmatprep.subr.mxu0 0.0
    %2168 = vmatpush1.msra.mxu0 0.0
    %2169 = vmatprep.mubr.f32.mxu0 0.0
    %2170 = vmatmul.mubr.f32.gmra.mrb[0].mxu0 %v1914
    %v2171 = vpop.f32.mrb[0].mxu0
    %v2172 = vadd.f32 0.0, %v2171
    %v2173 = vpop.f32.mrb[0].mxu0
    %2174 = vmatprep.mubr.f32.mxu0 0.0
    %2175 = vmatmul.mubr.f32.gmra.mrb[0].mxu0 %v1917
    %v2176 = vpop.f32.mrb[0].mxu0
    %v2177 = vadd.f32 0.0, %v2176
    %v2178 = vpop.f32.mrb[0].mxu0
    %2179 = vmatprep.mubr.f32.mxu0 0.0
    %2180 = vmatmul.mubr.f32.gmra.mrb[0].mxu0 %v1920
    %v2181 = vpop.f32.mrb[0].mxu0
    %v2182 = vadd.f32 0.0, %v2181
    %v2183 = vpop.f32.mrb[0].mxu0
    %2184 = vmatprep.mubr.f32.mxu0 0.0
    %2185 = vmatmul.mubr.f32.gmra.mrb[0].mxu0 %v1923
    %v2186 = vpop.f32.mrb[0].mxu0
    %v2187 = vadd.f32 0.0, %v2186
    %v2188 = vpop.f32.mrb[0].mxu0
    %2189 = vmatprep.mubr.f32.mxu0 0.0
    %2190 = vmatmul.mubr.f32.gmra.mrb[0].mxu0 %v1926
    %v2191 = vpop.f32.mrb[0].mxu0
    %v2192 = vadd.f32 0.0, %v2191
    %v2193 = vpop.f32.mrb[0].mxu0
    %2194 = vmatprep.mubr.f32.mxu0 0.0
    %2195 = vmatmul.mubr.f32.gmra.mrb[0].mxu0 %v1929
    %v2196 = vpop.f32.mrb[0].mxu0
    %v2197 = vadd.f32 0.0, %v2196
    %v2198 = vpop.f32.mrb[0].mxu0
    %2199 = vmatprep.mubr.f32.mxu0 0.0
    %2200 = vmatmul.mubr.f32.gmra.mrb[0].mxu0 %v1932
    %v2201 = vpop.f32.mrb[0].mxu0
    %v2202 = vadd.f32 0.0, %v2201
    %v2203 = vpop.f32.mrb[0].mxu0
    %2204 = vmatprep.mubr.f32.mxu0 0.0
    %2205 = vmatmul.mubr.f32.gmra.mrb[0].mxu0 %v1935
    %v2206 = vpop.f32.mrb[0].mxu0
    %v2207 = vadd.f32 0.0, %v2206
    %v2208 = vpop.f32.mrb[0].mxu0
    %2209 = vmatprep.mubr.f32.mxu0 0.0
    %2210 = vmatmul.mubr.f32.gmra.mrb[0].mxu0 %v1938
    %v2211 = vpop.f32.mrb[0].mxu0
    %v2212 = vadd.f32 0.0, %v2211
    %v2213 = vpop.f32.mrb[0].mxu0
    %2214 = vmatprep.mubr.f32.mxu0 0.0
    %2215 = vmatmul.mubr.f32.gmra.mrb[0].mxu0 %v1941
    %v2216 = vpop.f32.mrb[0].mxu0
    %v2217 = vadd.f32 0.0, %v2216
    %v2218 = vpop.f32.mrb[0].mxu0
    %2219 = vmatprep.mubr.f32.mxu0 0.0
    %2220 = vmatmul.mubr.f32.gmra.mrb[0].mxu0 %v1944
    %v2221 = vpop.f32.mrb[0].mxu0
    %v2222 = vadd.f32 0.0, %v2221
    %v2223 = vpop.f32.mrb[0].mxu0
    %2224 = vmatprep.mubr.f32.mxu0 0.0
    %2225 = vmatmul.mubr.f32.gmra.mrb[0].mxu0 %v1947
    %v2226 = vpop.f32.mrb[0].mxu0
    %v2227 = vadd.f32 0.0, %v2226
    %v2228 = vpop.f32.mrb[0].mxu0
    %2229 = vmatprep.mubr.f32.mxu0 0.0
    %2230 = vmatmul.mubr.f32.gmra.mrb[0].mxu0 %v1950
    %v2231 = vpop.f32.mrb[0].mxu0
    %v2232 = vadd.f32 0.0, %v2231
    %v2233 = vpop.f32.mrb[0].mxu0
    %2234 = vmatprep.mubr.f32.mxu0 0.0
    %2235 = vmatmul.mubr.f32.gmra.mrb[0].mxu0 %v1953
    %v2236 = vpop.f32.mrb[0].mxu0
    %v2237 = vadd.f32 0.0, %v2236
    %v2238 = vpop.f32.mrb[0].mxu0
    %2239 = vmatprep.mubr.f32.mxu0 0.0
    %2240 = vmatmul.mubr.f32.gmra.mrb[0].mxu0 %v1956
    %v2241 = vpop.f32.mrb[0].mxu0
    %v2242 = vadd.f32 0.0, %v2241
    %v2243 = vpop.f32.mrb[0].mxu0
    %2244 = vmatprep.mubr.f32.mxu0 0.0
    %2245 = vmatmul.mubr.f32.gmra.mrb[0].mxu0 %v1959
    %v2246 = vpop.f32.mrb[0].mxu0
    %v2247 = vadd.f32 0.0, %v2246
    %v2248 = vpop.f32.mrb[0].mxu0
    %2249 = vmatprep.mubr.f32.mxu0 0.0
    %2250 = vmatmul.mubr.f32.gmra.mrb[0].mxu0 %v1962
    %v2251 = vpop.f32.mrb[0].mxu0
    %v2252 = vadd.f32 0.0, %v2251
    %v2253 = vpop.f32.mrb[0].mxu0
    %2254 = vmatprep.mubr.f32.mxu0 0.0
    %2255 = vmatmul.mubr.f32.gmra.mrb[0].mxu0 %v1965
    %v2256 = vpop.f32.mrb[0].mxu0
    %v2257 = vadd.f32 0.0, %v2256
    %v2258 = vpop.f32.mrb[0].mxu0
    %2259 = vmatprep.mubr.f32.mxu0 0.0
    %2260 = vmatmul.mubr.f32.gmra.mrb[0].mxu0 %v1968
    %v2261 = vpop.f32.mrb[0].mxu0
    %v2262 = vadd.f32 0.0, %v2261
    %v2263 = vpop.f32.mrb[0].mxu0
    %2264 = vmatprep.mubr.f32.mxu0 0.0
    %2265 = vmatmul.mubr.f32.gmra.mrb[0].mxu0 %v1971
    %v2266 = vpop.f32.mrb[0].mxu0
    %v2267 = vadd.f32 0.0, %v2266
    %v2268 = vpop.f32.mrb[0].mxu0
    %2269 = vmatprep.mubr.f32.mxu0 0.0
    %2270 = vmatmul.mubr.f32.gmra.mrb[0].mxu0 %v1974
    %v2271 = vpop.f32.mrb[0].mxu0
    %v2272 = vadd.f32 0.0, %v2271
    %v2273 = vpop.f32.mrb[0].mxu0
    %2274 = vmatprep.mubr.f32.mxu0 0.0
    %2275 = vmatmul.mubr.f32.gmra.mrb[0].mxu0 %v1977
    %v2276 = vpop.f32.mrb[0].mxu0
    %v2277 = vadd.f32 0.0, %v2276
    %v2278 = vpop.f32.mrb[0].mxu0
    %2279 = vmatprep.mubr.f32.mxu0 0.0
    %2280 = vmatmul.mubr.f32.gmra.mrb[0].mxu0 %v1980
    %v2281 = vpop.f32.mrb[0].mxu0
    %v2282 = vadd.f32 0.0, %v2281
    %v2283 = vpop.f32.mrb[0].mxu0
    %2284 = vmatprep.mubr.f32.mxu0 0.0
    %2285 = vmatmul.mubr.f32.gmra.mrb[0].mxu0 %v1983
    %v2286 = vpop.f32.mrb[0].mxu0
    %v2287 = vadd.f32 0.0, %v2286
    %v2288 = vpop.f32.mrb[0].mxu0
    %2289 = vmatprep.mubr.f32.mxu0 0.0
    %2290 = vmatmul.mubr.f32.gmra.mrb[0].mxu0 %v1986
    %v2291 = vpop.f32.mrb[0].mxu0
    %v2292 = vadd.f32 0.0, %v2291
    %v2293 = vpop.f32.mrb[0].mxu0
    %2294 = vmatprep.mubr.f32.mxu0 0.0
    %2295 = vmatmul.mubr.f32.gmra.mrb[0].mxu0 %v1989
    %v2296 = vpop.f32.mrb[0].mxu0
    %v2297 = vadd.f32 0.0, %v2296
    %v2298 = vpop.f32.mrb[0].mxu0
    %2299 = vmatprep.mubr.f32.mxu0 0.0
    %2300 = vmatmul.mubr.f32.gmra.mrb[0].mxu0 %v1992
    %v2301 = vpop.f32.mrb[0].mxu0
    %v2302 = vadd.f32 0.0, %v2301
    %v2303 = vpop.f32.mrb[0].mxu0
    %2304 = vmatprep.mubr.f32.mxu0 0.0
    %2305 = vmatmul.mubr.f32.gmra.mrb[0].mxu0 %v1995
    %v2306 = vpop.f32.mrb[0].mxu0
    %v2307 = vadd.f32 0.0, %v2306
    %v2308 = vpop.f32.mrb[0].mxu0
    %2309 = vmatprep.mubr.f32.mxu0 0.0
    %2310 = vmatmul.mubr.f32.gmra.mrb[0].mxu0 %v1998
    %v2311 = vpop.f32.mrb[0].mxu0
    %v2312 = vadd.f32 0.0, %v2311
    %v2313 = vpop.f32.mrb[0].mxu0
    %2314 = vmatprep.mubr.f32.mxu0 0.0
    %2315 = vmatmul.mubr.f32.gmra.mrb[0].mxu0 %v2001
    %v2316 = vpop.f32.mrb[0].mxu0
    %v2317 = vadd.f32 0.0, %v2316
    %v2318 = vpop.f32.mrb[0].mxu0
    %2319 = vmatprep.mubr.f32.mxu0 0.0
    %2320 = vmatmul.mubr.f32.gmra.mrb[0].mxu0 %v2004
    %v2321 = vpop.f32.mrb[0].mxu0
    %v2322 = vadd.f32 0.0, %v2321
    %v2323 = vpop.f32.mrb[0].mxu0
    %2324 = vmatprep.mubr.f32.mxu0 0.0
    %2325 = vmatmul.mubr.f32.gmra.mrb[0].mxu0 %v2007
    %v2326 = vpop.f32.mrb[0].mxu0
    %v2327 = vadd.f32 0.0, %v2326
    %v2328 = vpop.f32.mrb[0].mxu0
    %2329 = vmatprep.mubr.f32.mxu0 0.0
    %2330 = vmatmul.mubr.f32.gmra.mrb[0].mxu0 %v2010
    %v2331 = vpop.f32.mrb[0].mxu0
    %v2332 = vadd.f32 0.0, %v2331
    %v2333 = vpop.f32.mrb[0].mxu0
    %2334 = vmatprep.mubr.f32.mxu0 0.0
    %2335 = vmatmul.mubr.f32.gmra.mrb[0].mxu0 %v2013
    %v2336 = vpop.f32.mrb[0].mxu0
    %v2337 = vadd.f32 0.0, %v2336
    %v2338 = vpop.f32.mrb[0].mxu0
    %2339 = vmatprep.mubr.f32.mxu0 0.0
    %2340 = vmatmul.mubr.f32.gmra.mrb[0].mxu0 %v2016
    %v2341 = vpop.f32.mrb[0].mxu0
    %v2342 = vadd.f32 0.0, %v2341
    %v2343 = vpop.f32.mrb[0].mxu0
    %2344 = vmatprep.mubr.f32.mxu0 0.0
    %2345 = vmatmul.mubr.f32.gmra.mrb[0].mxu0 %v2019
    %v2346 = vpop.f32.mrb[0].mxu0
    %v2347 = vadd.f32 0.0, %v2346
    %v2348 = vpop.f32.mrb[0].mxu0
    %2349 = vmatprep.mubr.f32.mxu0 0.0
    %2350 = vmatmul.mubr.f32.gmra.mrb[0].mxu0 %v2022
    %v2351 = vpop.f32.mrb[0].mxu0
    %v2352 = vadd.f32 0.0, %v2351
    %v2353 = vpop.f32.mrb[0].mxu0
    %2354 = vmatprep.mubr.f32.mxu0 0.0
    %2355 = vmatmul.mubr.f32.gmra.mrb[0].mxu0 %v2025
    %v2356 = vpop.f32.mrb[0].mxu0
    %v2357 = vadd.f32 0.0, %v2356
    %v2358 = vpop.f32.mrb[0].mxu0
    %2359 = vmatprep.mubr.f32.mxu0 0.0
    %2360 = vmatmul.mubr.f32.gmra.mrb[0].mxu0 %v2028
    %v2361 = vpop.f32.mrb[0].mxu0
    %v2362 = vadd.f32 0.0, %v2361
    %v2363 = vpop.f32.mrb[0].mxu0
    %2364 = vmatprep.mubr.f32.mxu0 0.0
    %2365 = vmatmul.mubr.f32.gmra.mrb[0].mxu0 %v2031
    %v2366 = vpop.f32.mrb[0].mxu0
    %v2367 = vadd.f32 0.0, %v2366
    %v2368 = vpop.f32.mrb[0].mxu0
    %2369 = vmatprep.mubr.f32.mxu0 0.0
    %2370 = vmatmul.mubr.f32.gmra.mrb[0].mxu0 %v2034
    %v2371 = vpop.f32.mrb[0].mxu0
    %v2372 = vadd.f32 0.0, %v2371
    %v2373 = vpop.f32.mrb[0].mxu0
    %2374 = vmatprep.mubr.f32.mxu0 0.0
    %2375 = vmatmul.mubr.f32.gmra.mrb[0].mxu0 %v2037
    %v2376 = vpop.f32.mrb[0].mxu0
    %v2377 = vadd.f32 0.0, %v2376
    %v2378 = vpop.f32.mrb[0].mxu0
    %2379 = vmatprep.mubr.f32.mxu0 0.0
    %2380 = vmatmul.mubr.f32.gmra.mrb[0].mxu0 %v2040
    %v2381 = vpop.f32.mrb[0].mxu0
    %v2382 = vadd.f32 0.0, %v2381
    %v2383 = vpop.f32.mrb[0].mxu0
    %2384 = vmatprep.mubr.f32.mxu0 0.0
    %2385 = vmatmul.mubr.f32.gmra.mrb[0].mxu0 %v2043
    %v2386 = vpop.f32.mrb[0].mxu0
    %v2387 = vadd.f32 0.0, %v2386
    %v2388 = vpop.f32.mrb[0].mxu0
    %2389 = vmatprep.mubr.f32.mxu0 0.0
    %2390 = vmatmul.mubr.f32.gmra.mrb[0].mxu0 %v2046
    %v2391 = vpop.f32.mrb[0].mxu0
    %v2392 = vadd.f32 0.0, %v2391
    %v2393 = vpop.f32.mrb[0].mxu0
    %2394 = vmatprep.mubr.f32.mxu0 0.0
    %2395 = vmatmul.mubr.f32.gmra.mrb[0].mxu0 %v2049
    %v2396 = vpop.f32.mrb[0].mxu0
    %v2397 = vadd.f32 0.0, %v2396
    %v2398 = vpop.f32.mrb[0].mxu0
    %2399 = vmatprep.mubr.f32.mxu0 0.0
    %2400 = vmatmul.mubr.f32.gmra.mrb[0].mxu0 %v2052
    %v2401 = vpop.f32.mrb[0].mxu0
    %v2402 = vadd.f32 0.0, %v2401
    %v2403 = vpop.f32.mrb[0].mxu0
    %2404 = vmatprep.mubr.f32.mxu0 0.0
    %2405 = vmatmul.mubr.f32.gmra.mrb[0].mxu0 %v2055
    %v2406 = vpop.f32.mrb[0].mxu0
    %v2407 = vadd.f32 0.0, %v2406
    %v2408 = vpop.f32.mrb[0].mxu0
    %2409 = vmatprep.mubr.f32.mxu0 0.0
    %2410 = vmatmul.mubr.f32.gmra.mrb[0].mxu0 %v2058
    %v2411 = vpop.f32.mrb[0].mxu0
    %v2412 = vadd.f32 0.0, %v2411
    %v2413 = vpop.f32.mrb[0].mxu0
    %2414 = vmatprep.mubr.f32.mxu0 0.0
    %2415 = vmatmul.mubr.f32.gmra.mrb[0].mxu0 %v2061
    %v2416 = vpop.f32.mrb[0].mxu0
    %v2417 = vadd.f32 0.0, %v2416
    %v2418 = vpop.f32.mrb[0].mxu0
    %2419 = vmatprep.mubr.f32.mxu0 0.0
    %2420 = vmatmul.mubr.f32.gmra.mrb[0].mxu0 %v2064
    %v2421 = vpop.f32.mrb[0].mxu0
    %v2422 = vadd.f32 0.0, %v2421
    %v2423 = vpop.f32.mrb[0].mxu0
    %2424 = vmatprep.mubr.f32.mxu0 0.0
    %2425 = vmatmul.mubr.f32.gmra.mrb[0].mxu0 %v2067
    %v2426 = vpop.f32.mrb[0].mxu0
    %v2427 = vadd.f32 0.0, %v2426
    %v2428 = vpop.f32.mrb[0].mxu0
    %2429 = vmatprep.mubr.f32.mxu0 0.0
    %2430 = vmatmul.mubr.f32.gmra.mrb[0].mxu0 %v2070
    %v2431 = vpop.f32.mrb[0].mxu0
    %v2432 = vadd.f32 0.0, %v2431
    %v2433 = vpop.f32.mrb[0].mxu0
    %2434 = vmatprep.mubr.f32.mxu0 0.0
    %2435 = vmatmul.mubr.f32.gmra.mrb[0].mxu0 %v2073
    %v2436 = vpop.f32.mrb[0].mxu0
    %v2437 = vadd.f32 0.0, %v2436
    %v2438 = vpop.f32.mrb[0].mxu0
    %2439 = vmatprep.mubr.f32.mxu0 0.0
    %2440 = vmatmul.mubr.f32.gmra.mrb[0].mxu0 %v2076
    %v2441 = vpop.f32.mrb[0].mxu0
    %v2442 = vadd.f32 0.0, %v2441
    %v2443 = vpop.f32.mrb[0].mxu0
    %2444 = vmatprep.mubr.f32.mxu0 0.0
    %2445 = vmatmul.mubr.f32.gmra.mrb[0].mxu0 %v2079
    %v2446 = vpop.f32.mrb[0].mxu0
    %v2447 = vadd.f32 0.0, %v2446
    %v2448 = vpop.f32.mrb[0].mxu0
    %2449 = vmatprep.mubr.f32.mxu0 0.0
    %2450 = vmatmul.mubr.f32.gmra.mrb[0].mxu0 %v2082
    %v2451 = vpop.f32.mrb[0].mxu0
    %v2452 = vadd.f32 0.0, %v2451
    %v2453 = vpop.f32.mrb[0].mxu0
    %2454 = vmatprep.mubr.f32.mxu0 0.0
    %2455 = vmatmul.mubr.f32.gmra.mrb[0].mxu0 %v2085
    %v2456 = vpop.f32.mrb[0].mxu0
    %v2457 = vadd.f32 0.0, %v2456
    %v2458 = vpop.f32.mrb[0].mxu0
    %2459 = vmatprep.mubr.f32.mxu0 0.0
    %2460 = vmatmul.mubr.f32.gmra.mrb[0].mxu0 %v2088
    %v2461 = vpop.f32.mrb[0].mxu0
    %v2462 = vadd.f32 0.0, %v2461
    %v2463 = vpop.f32.mrb[0].mxu0
    %2464 = vmatprep.mubr.f32.mxu0 0.0
    %2465 = vmatmul.mubr.f32.gmra.mrb[0].mxu0 %v2091
    %v2466 = vpop.f32.mrb[0].mxu0
    %v2467 = vadd.f32 0.0, %v2466
    %v2468 = vpop.f32.mrb[0].mxu0
    %2469 = vmatprep.mubr.f32.mxu0 0.0
    %2470 = vmatmul.mubr.f32.gmra.mrb[0].mxu0 %v2094
    %v2471 = vpop.f32.mrb[0].mxu0
    %v2472 = vadd.f32 0.0, %v2471
    %v2473 = vpop.f32.mrb[0].mxu0
    %2474 = vmatprep.mubr.f32.mxu0 0.0
    %2475 = vmatmul.mubr.f32.gmra.mrb[0].mxu0 %v2097
    %v2476 = vpop.f32.mrb[0].mxu0
    %v2477 = vadd.f32 0.0, %v2476
    %v2478 = vpop.f32.mrb[0].mxu0
    %2479 = vmatprep.mubr.f32.mxu0 0.0
    %2480 = vmatmul.mubr.f32.gmra.mrb[0].mxu0 %v2100
    %v2481 = vpop.f32.mrb[0].mxu0
    %v2482 = vadd.f32 0.0, %v2481
    %v2483 = vpop.f32.mrb[0].mxu0
    %2484 = vmatprep.mubr.f32.mxu0 0.0
    %2485 = vmatmul.mubr.f32.gmra.mrb[0].mxu0 %v2103
    %v2486 = vpop.f32.mrb[0].mxu0
    %v2487 = vadd.f32 0.0, %v2486
    %v2488 = vpop.f32.mrb[0].mxu0
    %2489 = vdwg.mxu0
    %v2490 = vadd.f32 %v2172, %v2177
    %v2491 = vadd.f32 %v2490, %v2182
    %v2492 = vadd.f32 %v2491, %v2187
    %v2493 = vadd.f32 %v2492, %v2192
    %v2494 = vadd.f32 %v2493, %v2197
    %v2495 = vadd.f32 %v2494, %v2202
    %v2496 = vadd.f32 %v2495, %v2207
    %v2497 = vadd.f32 %v2496, %v2212
    %v2498 = vadd.f32 %v2497, %v2217
    %v2499 = vadd.f32 %v2498, %v2222
    %v2500 = vadd.f32 %v2499, %v2227
    %v2501 = vadd.f32 %v2500, %v2232
    %v2502 = vadd.f32 %v2501, %v2237
    %v2503 = vadd.f32 %v2502, %v2242
    %v2504 = vadd.f32 %v2503, %v2247
    %v2505 = vadd.f32 %v2504, %v2252
    %v2506 = vadd.f32 %v2505, %v2257
    %v2507 = vadd.f32 %v2506, %v2262
    %v2508 = vadd.f32 %v2507, %v2267
    %v2509 = vadd.f32 %v2508, %v2272
    %v2510 = vadd.f32 %v2509, %v2277
    %v2511 = vadd.f32 %v2510, %v2282
    %v2512 = vadd.f32 %v2511, %v2287
    %v2513 = vadd.f32 %v2512, %v2292
    %v2514 = vadd.f32 %v2513, %v2297
    %v2515 = vadd.f32 %v2514, %v2302
    %v2516 = vadd.f32 %v2515, %v2307
    %v2517 = vadd.f32 %v2516, %v2312
    %v2518 = vadd.f32 %v2517, %v2317
    %v2519 = vadd.f32 %v2518, %v2322
    %v2520 = vadd.f32 %v2519, %v2327
    %v2521 = vadd.f32 %v2520, %v2332
    %v2522 = vadd.f32 %v2521, %v2337
    %v2523 = vadd.f32 %v2522, %v2342
    %v2524 = vadd.f32 %v2523, %v2347
    %v2525 = vadd.f32 %v2524, %v2352
    %v2526 = vadd.f32 %v2525, %v2357
    %v2527 = vadd.f32 %v2526, %v2362
    %v2528 = vadd.f32 %v2527, %v2367
    %v2529 = vadd.f32 %v2528, %v2372
    %v2530 = vadd.f32 %v2529, %v2377
    %v2531 = vadd.f32 %v2530, %v2382
    %v2532 = vadd.f32 %v2531, %v2387
    %v2533 = vadd.f32 %v2532, %v2392
    %v2534 = vadd.f32 %v2533, %v2397
    %v2535 = vadd.f32 %v2534, %v2402
    %v2536 = vadd.f32 %v2535, %v2407
    %v2537 = vadd.f32 %v2536, %v2412
    %v2538 = vadd.f32 %v2537, %v2417
    %v2539 = vadd.f32 %v2538, %v2422
    %v2540 = vadd.f32 %v2539, %v2427
    %v2541 = vadd.f32 %v2540, %v2432
    %v2542 = vadd.f32 %v2541, %v2437
    %v2543 = vadd.f32 %v2542, %v2442
    %v2544 = vadd.f32 %v2543, %v2447
    %v2545 = vadd.f32 %v2544, %v2452
    %v2546 = vadd.f32 %v2545, %v2457
    %v2547 = vadd.f32 %v2546, %v2462
    %v2548 = vadd.f32 %v2547, %v2467
    %v2549 = vadd.f32 %v2548, %v2472
    %v2550 = vadd.f32 %v2549, %v2477
    %v2551 = vadd.f32 %v2550, %v2482
    %v2552 = vadd.f32 %v2551, %v2487
    %v2553 = vrot.slane %v2552, 4
    %v2554 = vadd.f32 %v2552, %v2553
    %v2555 = vrot.slane %v2554, 2
    %v2556 = vadd.f32 %v2554, %v2555
    %v2557 = vrot.slane %v2556, 1
    %v2558 = vadd.f32 %v2556, %v2557
    %2559 = vst [vmem:[#allocation2] sm:$0x1] %v2558
    %v2560 = vmul.f32 %v2172, %v2172
    %v2561 = vmul.f32 %v2177, %v2177
    %v2562 = vmul.f32 %v2182, %v2182
    %v2563 = vmul.f32 %v2187, %v2187
    %v2564 = vmul.f32 %v2192, %v2192
    %v2565 = vmul.f32 %v2197, %v2197
    %v2566 = vmul.f32 %v2202, %v2202
    %v2567 = vmul.f32 %v2207, %v2207
    %v2568 = vmul.f32 %v2212, %v2212
    %v2569 = vmul.f32 %v2217, %v2217
    %v2570 = vmul.f32 %v2222, %v2222
    %v2571 = vmul.f32 %v2227, %v2227
    %v2572 = vmul.f32 %v2232, %v2232
    %v2573 = vmul.f32 %v2237, %v2237
    %v2574 = vmul.f32 %v2242, %v2242
    %v2575 = vmul.f32 %v2247, %v2247
    %v2576 = vmul.f32 %v2252, %v2252
    %v2577 = vmul.f32 %v2257, %v2257
    %v2578 = vmul.f32 %v2262, %v2262
    %v2579 = vmul.f32 %v2267, %v2267
    %v2580 = vmul.f32 %v2272, %v2272
    %v2581 = vmul.f32 %v2277, %v2277
    %v2582 = vmul.f32 %v2282, %v2282
    %v2583 = vmul.f32 %v2287, %v2287
    %v2584 = vmul.f32 %v2292, %v2292
    %v2585 = vmul.f32 %v2297, %v2297
    %v2586 = vmul.f32 %v2302, %v2302
    %v2587 = vmul.f32 %v2307, %v2307
    %v2588 = vmul.f32 %v2312, %v2312
    %v2589 = vmul.f32 %v2317, %v2317
    %v2590 = vmul.f32 %v2322, %v2322
    %v2591 = vmul.f32 %v2327, %v2327
    %v2592 = vmul.f32 %v2332, %v2332
    %v2593 = vmul.f32 %v2337, %v2337
    %v2594 = vmul.f32 %v2342, %v2342
    %v2595 = vmul.f32 %v2347, %v2347
    %v2596 = vmul.f32 %v2352, %v2352
    %v2597 = vmul.f32 %v2357, %v2357
    %v2598 = vmul.f32 %v2362, %v2362
    %v2599 = vmul.f32 %v2367, %v2367
    %v2600 = vmul.f32 %v2372, %v2372
    %v2601 = vmul.f32 %v2377, %v2377
    %v2602 = vmul.f32 %v2382, %v2382
    %v2603 = vmul.f32 %v2387, %v2387
    %v2604 = vmul.f32 %v2392, %v2392
    %v2605 = vmul.f32 %v2397, %v2397
    %v2606 = vmul.f32 %v2402, %v2402
    %v2607 = vmul.f32 %v2407, %v2407
    %v2608 = vmul.f32 %v2412, %v2412
    %v2609 = vmul.f32 %v2417, %v2417
    %v2610 = vmul.f32 %v2422, %v2422
    %v2611 = vmul.f32 %v2427, %v2427
    %v2612 = vmul.f32 %v2432, %v2432
    %v2613 = vmul.f32 %v2437, %v2437
    %v2614 = vmul.f32 %v2442, %v2442
    %v2615 = vmul.f32 %v2447, %v2447
    %v2616 = vmul.f32 %v2452, %v2452
    %v2617 = vmul.f32 %v2457, %v2457
    %v2618 = vmul.f32 %v2462, %v2462
    %v2619 = vmul.f32 %v2467, %v2467
    %v2620 = vmul.f32 %v2472, %v2472
    %v2621 = vmul.f32 %v2477, %v2477
    %v2622 = vmul.f32 %v2482, %v2482
    %v2623 = vmul.f32 %v2487, %v2487
    %v2624 = vadd.f32 %v2560, %v2561
    %v2625 = vadd.f32 %v2624, %v2562
    %v2626 = vadd.f32 %v2625, %v2563
    %v2627 = vadd.f32 %v2626, %v2564
    %v2628 = vadd.f32 %v2627, %v2565
    %v2629 = vadd.f32 %v2628, %v2566
    %v2630 = vadd.f32 %v2629, %v2567
    %v2631 = vadd.f32 %v2630, %v2568
    %v2632 = vadd.f32 %v2631, %v2569
    %v2633 = vadd.f32 %v2632, %v2570
    %v2634 = vadd.f32 %v2633, %v2571
    %v2635 = vadd.f32 %v2634, %v2572
    %v2636 = vadd.f32 %v2635, %v2573
    %v2637 = vadd.f32 %v2636, %v2574
    %v2638 = vadd.f32 %v2637, %v2575
    %v2639 = vadd.f32 %v2638, %v2576
    %v2640 = vadd.f32 %v2639, %v2577
    %v2641 = vadd.f32 %v2640, %v2578
    %v2642 = vadd.f32 %v2641, %v2579
    %v2643 = vadd.f32 %v2642, %v2580
    %v2644 = vadd.f32 %v2643, %v2581
    %v2645 = vadd.f32 %v2644, %v2582
    %v2646 = vadd.f32 %v2645, %v2583
    %v2647 = vadd.f32 %v2646, %v2584
    %v2648 = vadd.f32 %v2647, %v2585
    %v2649 = vadd.f32 %v2648, %v2586
    %v2650 = vadd.f32 %v2649, %v2587
    %v2651 = vadd.f32 %v2650, %v2588
    %v2652 = vadd.f32 %v2651, %v2589
    %v2653 = vadd.f32 %v2652, %v2590
    %v2654 = vadd.f32 %v2653, %v2591
    %v2655 = vadd.f32 %v2654, %v2592
    %v2656 = vadd.f32 %v2655, %v2593
    %v2657 = vadd.f32 %v2656, %v2594
    %v2658 = vadd.f32 %v2657, %v2595
    %v2659 = vadd.f32 %v2658, %v2596
    %v2660 = vadd.f32 %v2659, %v2597
    %v2661 = vadd.f32 %v2660, %v2598
    %v2662 = vadd.f32 %v2661, %v2599
    %v2663 = vadd.f32 %v2662, %v2600
    %v2664 = vadd.f32 %v2663, %v2601
    %v2665 = vadd.f32 %v2664, %v2602
    %v2666 = vadd.f32 %v2665, %v2603
    %v2667 = vadd.f32 %v2666, %v2604
    %v2668 = vadd.f32 %v2667, %v2605
    %v2669 = vadd.f32 %v2668, %v2606
    %v2670 = vadd.f32 %v2669, %v2607
    %v2671 = vadd.f32 %v2670, %v2608
    %v2672 = vadd.f32 %v2671, %v2609
    %v2673 = vadd.f32 %v2672, %v2610
    %v2674 = vadd.f32 %v2673, %v2611
    %v2675 = vadd.f32 %v2674, %v2612
    %v2676 = vadd.f32 %v2675, %v2613
    %v2677 = vadd.f32 %v2676, %v2614
    %v2678 = vadd.f32 %v2677, %v2615
    %v2679 = vadd.f32 %v2678, %v2616
    %v2680 = vadd.f32 %v2679, %v2617
    %v2681 = vadd.f32 %v2680, %v2618
    %v2682 = vadd.f32 %v2681, %v2619
    %v2683 = vadd.f32 %v2682, %v2620
    %v2684 = vadd.f32 %v2683, %v2621
    %v2685 = vadd.f32 %v2684, %v2622
    %v2686 = vadd.f32 %v2685, %v2623
    %v2687 = vrot.slane %v2686, 4
    %v2688 = vadd.f32 %v2686, %v2687
    %v2689 = vrot.slane %v2688, 2
    %v2690 = vadd.f32 %v2688, %v2689
    %v2691 = vrot.slane %v2690, 1
    %v2692 = vadd.f32 %v2690, %v2691
    %2693 = vst [vmem:[#allocation4] sm:$0x1] %v2692
    // Predicated region
    $region18: #{tpu_custom_call.1} parent=1 // pred_check
      _
    $region19: #{tpu_custom_call.1} parent=1 // pred_check_branch
      %2695 = sbr.rel (0) target = $region21
    $region20: #{tpu_custom_call.1} parent=1 // pred_region
      %s2697 = ssub.s32 16, 16
      %2698 = vsyncadd [#allocation3], %s2697
      %s2700 = sshll.u32 [#allocation2], 4
      %s2701 = int_to_ptr.vmem [resolvable:$true] %s2700
      %2703 = dma.vmem_to_hbm [thread:$0]  %s2701, 16, %s4, [#allocation3]
    $region21: #{tpu_custom_call.1} parent=1 // pred_fallthru
      _
    // Predicated region
    $region22: #{tpu_custom_call.1} parent=1 // pred_check
      _
    $region23: #{tpu_custom_call.1} parent=1 // pred_check_branch
      %2705 = sbr.rel (0) target = $region25
    $region24: #{tpu_custom_call.1} parent=1 // pred_region
      %s2707 = ssub.s32 16, 16
      %2708 = vsyncadd [#allocation5], %s2707
      %s2710 = sshll.u32 [#allocation4], 4
      %s2711 = int_to_ptr.vmem [resolvable:$true] %s2710
      %2713 = dma.vmem_to_hbm [thread:$0]  %s2711, 16, %s5, [#allocation5]
    $region25: #{tpu_custom_call.1} parent=1 // pred_fallthru
      _
    // Predicated region
    $region26: #{tpu_custom_call.1} parent=1 // pred_check
      _
    $region27: #{tpu_custom_call.1} parent=1 // pred_check_branch
      %2715 = sbr.rel (0) target = $region29
    $region28: #{tpu_custom_call.1} parent=1 // pred_region
      %2716 = dma.done [#allocation3], 16
    $region29: #{tpu_custom_call.1} parent=1 // pred_fallthru
      _
    // Predicated region
    $region30: #{tpu_custom_call.1} parent=1 // pred_check
      _
    $region31: #{tpu_custom_call.1} parent=1 // pred_check_branch
      %2718 = sbr.rel (0) target = $region33
    $region32: #{tpu_custom_call.1} parent=1 // pred_region
      %2719 = dma.done [#allocation5], 16
    $region33: #{tpu_custom_call.1} parent=1 // pred_fallthru
      _
    %2720 = vsyncpa [#allocation3], 1
    %2721 = vsyncpa [#allocation5], 1

</llo_original>
